<compile_context>
chip_gen: v7x
topology: tpu7x:2x2x1
jax: 0.10.0
libtpu: 0.0.40
codegen_flags: <defaults>
</compile_context>

<pallas_src>
import functools

import jax
import jax.numpy as jnp
from jax.experimental import pallas as pl
from jax.experimental.pallas import tpu as pltpu


def _stem_pool_kernel(x_ref, w_ref, b_ref, out_ref, acc_ref,
                      *, K, W, Wp, TH, Cout, inv_hw):
    """Fused stem conv + SiLU + (partial) global-average-pool for one image tile.

    x_ref   : (1, 1, (TH+K)*Wp, Cin)  bf16  flattened padded-row slab
    w_ref   : (K*K, Cin, Cout)        bf16  conv weight, (dy*K+dx) major
    b_ref   : (1, Cout)               f32   conv bias
    out_ref : (1, 1, Cout)            f32   pooled features for this image
    acc_ref : (1, Cout)               f32   running spatial sum (scratch)
    """
    t = pl.program_id(1)

    @pl.when(t == 0)
    def _init():
        acc_ref[...] = jnp.zeros_like(acc_ref)

    TQ = TH * Wp                        # spatial positions computed this tile
    x = x_ref[0, 0]                     # ((TH+K)*Wp, Cin) bf16

    # Conv expressed as K*K shifted matmuls on the MXU, f32 accumulation.
    z = jnp.zeros((TQ, Cout), jnp.float32)
    for dy in range(K):
        for dx in range(K):
            off = dy * Wp + dx          # static flat offset into the slab
            z = z + jnp.dot(x[off:off + TQ, :], w_ref[dy * K + dx],
                            preferred_element_type=jnp.float32)
    z = z + b_ref[...]

    # SiLU / swish strictly in f32 (EUP sigmoid + VPU multiply).
    feat = z * jax.nn.sigmoid(z)

    # Mask the phantom columns (x >= W) of the padded-row layout, then add
    # this tile's spatial sum into the accumulator.
    col = jax.lax.broadcasted_iota(jnp.int32, (TQ, 1), 0) % Wp
    feat = jnp.where(col < W, feat, 0.0)
    acc_ref[...] += jnp.sum(feat, axis=0, keepdims=True)

    @pl.when(t == pl.num_programs(1) - 1)
    def _finalize():
        out_ref[...] = (acc_ref[...] * inv_hw).reshape(1, 1, Cout)


def _head_kernel(f_ref, w_ref, b_ref, out_ref):
    """Batched classifier head: (B, Cout) x (Cout, n_class) + bias."""
    out_ref[...] = (
        jnp.dot(f_ref[...], w_ref[...], preferred_element_type=jnp.float32)
        + b_ref[...])


def _pick_tile_rows(H, Wp, Cout, budget_bytes=6 << 20):
    """Largest divisor of H whose f32 activation tile fits the VMEM budget."""
    best = 1
    for th in range(1, H + 1):
        if H % th == 0 and th * Wp * Cout * 4 <= budget_bytes:
            best = th
    return best


def mask_classifier_forward(x_nchw, params, *, tile_rows=None,
                            vmem_limit_bytes=None):
    """x_nchw: (B, Cin, H, W) float32.  Returns (B, n_class) float32 logits."""
    w_conv = params["w_conv"]          # (K, K, Cin, Cout)
    b_conv = params["b_conv"]          # (Cout,)
    w_head = params["w_head"]          # (Cout, n_class)
    b_head = params["b_head"]          # (n_class,)

    B, Cin, H, W = x_nchw.shape
    K = w_conv.shape[0]
    Cout = w_conv.shape[-1]
    n_class = w_head.shape[-1]
    assert K % 2 == 1, "odd kernel size expected for 'same' conv"
    pad = K // 2
    Wp = W + 2 * pad                   # padded width

    TH = tile_rows if tile_rows is not None else _pick_tile_rows(H, Wp, Cout)
    assert H % TH == 0, (H, TH)
    nT = H // TH
    SLAB = (TH + K) * Wp               # TH+K-1 conv rows + 1 guard row

    # --- glue: NCHW -> NHWC, pad, overlapping row-tile slabs (only K halo
    #     rows duplicated per tile, instead of the K^2 x blow-up of im2col) --
    x = jnp.transpose(x_nchw, (0, 2, 3, 1))                    # (B, H, W, Cin)
    xpad = jnp.pad(x, ((0, 0), (pad, K - pad), (pad, pad), (0, 0)))
    slabs = jnp.stack(
        [xpad[:, t * TH:t * TH + TH + K] for t in range(nT)], axis=1)
    slabs = slabs.reshape(B, nT, SLAB, Cin).astype(jnp.bfloat16)

    w_mat = w_conv.reshape(K * K, Cin, Cout).astype(jnp.bfloat16)
    b_mat = b_conv.reshape(1, Cout).astype(jnp.float32)

    kernel = functools.partial(
        _stem_pool_kernel, K=K, W=W, Wp=Wp, TH=TH, Cout=Cout,
        inv_hw=1.0 / float(H * W))

    # NOTE: for production image sizes, set vmem_limit_bytes per generation
    # (v7x has 64 MiB VMEM/TC) and re-derive tile_rows accordingly.
    compiler_params = pltpu.CompilerParams(
        dimension_semantics=("parallel", "arbitrary"),
        vmem_limit_bytes=vmem_limit_bytes)

    pooled = pl.pallas_call(
        kernel,
        out_shape=jax.ShapeDtypeStruct((B, 1, Cout), jnp.float32),
        grid_spec=pltpu.PrefetchScalarGridSpec(
            num_scalar_prefetch=0,
            grid=(B, nT),              # batch parallel, spatial reduction last
            in_specs=[
                pl.BlockSpec((1, 1, SLAB, Cin), lambda b, t: (b, t, 0, 0)),
                pl.BlockSpec((K * K, Cin, Cout), lambda b, t: (0, 0, 0)),
                pl.BlockSpec((1, Cout), lambda b, t: (0, 0)),
            ],
            out_specs=pl.BlockSpec((1, 1, Cout), lambda b, t: (b, 0, 0)),
            scratch_shapes=[pltpu.VMEM((1, Cout), jnp.float32)],
        ),
        compiler_params=compiler_params,
    )(slabs, w_mat, b_mat)
    pooled = pooled.reshape(B, Cout)

    # --- classifier head: a single batched GEMM over all images -------------
    logits = pl.pallas_call(
        _head_kernel,
        out_shape=jax.ShapeDtypeStruct((B, n_class), jnp.float32),
        grid=(1,),
        in_specs=[
            pl.BlockSpec((B, Cout), lambda i: (0, 0)),
            pl.BlockSpec((Cout, n_class), lambda i: (0, 0)),
            pl.BlockSpec((1, n_class), lambda i: (0, 0)),
        ],
        out_specs=pl.BlockSpec((B, n_class), lambda i: (0, 0)),
    )(pooled, w_head.astype(jnp.float32),
      b_head.reshape(1, n_class).astype(jnp.float32))
    return logits


def init_params(key, cin, cout, k, n_class):
    k1, k2, k3, k4 = jax.random.split(key, 4)
    return {
        "w_conv": jax.random.normal(k1, (k, k, cin, cout), jnp.float32)
        / jnp.sqrt(k * k * cin),
        "b_conv": 0.01 * jax.random.normal(k2, (cout,), jnp.float32),
        "w_head": jax.random.normal(k3, (cout, n_class), jnp.float32)
        / jnp.sqrt(cout),
        "b_head": 0.01 * jax.random.normal(k4, (n_class,), jnp.float32),
    }


def _reference_forward(x_nchw, params):
    """Plain-JAX reference with the same bf16 operand quantization."""
    x = jnp.transpose(x_nchw, (0, 2, 3, 1)).astype(jnp.bfloat16).astype(jnp.float32)
    w = params["w_conv"].astype(jnp.bfloat16).astype(jnp.float32)
    feat = jax.lax.conv_general_dilated(
        x, w, window_strides=(1, 1), padding="SAME",
        dimension_numbers=("NHWC", "HWIO", "NHWC"),
        precision=jax.lax.Precision.HIGHEST)
    feat = feat + params["b_conv"]
    feat = feat * jax.nn.sigmoid(feat)
    pooled = jnp.mean(feat, axis=(1, 2))
    return pooled @ params["w_head"] + params["b_head"]


if __name__ == "__main__":
    key = jax.random.PRNGKey(0)
    kx, kp = jax.random.split(key)

    B, Cin, H, W = 2, 4, 16, 16
    Cout, K, N_CLASS = 128, 3, 5       # Cout=128 -> lane-dense pooled features

    x = jax.random.normal(kx, (B, Cin, H, W), jnp.float32)
    params = init_params(kp, Cin, Cout, K, N_CLASS)

    fwd = jax.jit(functools.partial(
        mask_classifier_forward, params=params, tile_rows=8))  # 2 spatial tiles
    logits = fwd(x)
    jax.block_until_ready(logits)

    assert logits.shape == (B, N_CLASS), logits.shape
    assert logits.dtype == jnp.float32
    assert bool(jnp.all(jnp.isfinite(logits)))

    ref = _reference_forward(x, params)
    assert bool(jnp.allclose(logits, ref, rtol=2e-2, atol=2e-2)), (
        float(jnp.max(jnp.abs(logits - ref))))

    print("KERNEL_OK")
</pallas_src>

<mosaic_0001>
module attributes {stable_mosaic.version = 11 : i64} {
  func.func @_head_kernel(%arg0: i32, %arg1: memref<2x128xf32, #tpu.memory_space<vmem>>, %arg2: memref<128x5xf32, #tpu.memory_space<vmem>>, %arg3: memref<1x5xf32, #tpu.memory_space<vmem>>, %arg4: memref<2x5xf32, #tpu.memory_space<vmem>>) attributes {dimension_semantics = [#tpu.dimension_semantics<arbitrary>], iteration_bounds = array<i64: 1>, scalar_prefetch = 0 : i64, scratch_operands = 0 : i64, tpu.core_type = #tpu.core_type<tc>, window_params = [{pipeline_mode = #tpu.pipeline_mode<synchronous>, transform_indices = @transform_0, window_bounds = array<i64: 2, 128>}, {pipeline_mode = #tpu.pipeline_mode<synchronous>, transform_indices = @transform_1, window_bounds = array<i64: 128, 5>}, {pipeline_mode = #tpu.pipeline_mode<synchronous>, transform_indices = @transform_2, window_bounds = array<i64: 1, 5>}, {pipeline_mode = #tpu.pipeline_mode<synchronous>, transform_indices = @transform_3, window_bounds = array<i64: 2, 5>}]} {
    %c0 = arith.constant 0 : index
    %c0_0 = arith.constant 0 : index
    %0 = vector.load %arg1[%c0, %c0_0] : memref<2x128xf32, #tpu.memory_space<vmem>>, vector<2x128xf32>
    %c0_1 = arith.constant 0 : index
    %c0_2 = arith.constant 0 : index
    %1 = vector.load %arg2[%c0_1, %c0_2] : memref<128x5xf32, #tpu.memory_space<vmem>>, vector<128x5xf32>
    %cst = arith.constant dense<0.000000e+00> : vector<2x5xf32>
    %2 = tpu.matmul %0, %1, %cst {dimension_numbers = #tpu.dot_dimension_numbers<[1], [0], [0], [1], [0, 0, 1, 1], [], []>} : vector<2x128xf32>, vector<128x5xf32>, vector<2x5xf32> -> vector<2x5xf32>
    %c0_3 = arith.constant 0 : index
    %c0_4 = arith.constant 0 : index
    %3 = vector.load %arg3[%c0_3, %c0_4] : memref<1x5xf32, #tpu.memory_space<vmem>>, vector<1x5xf32>
    %4 = vector.broadcast %3 : vector<1x5xf32> to vector<2x5xf32>
    %5 = arith.addf %2, %4 : vector<2x5xf32>
    %c0_5 = arith.constant 0 : index
    %c0_6 = arith.constant 0 : index
    %6 = vector.load %arg4[%c0_5, %c0_6] : memref<2x5xf32, #tpu.memory_space<vmem>>, vector<2x5xf32>
    tpu.vector_store %arg4[%c0_5, %c0_6], %5 {strides = array<i32>} : memref<2x5xf32, #tpu.memory_space<vmem>>, vector<2x5xf32>,
    return
  }
  func.func @transform_0(%arg0: i32) -> (i32, i32) {
    %c0_i32 = arith.constant 0 : i32
    %c0_i32_0 = arith.constant 0 : i32
    %c0_i32_1 = arith.constant 0 : i32
    return %c0_i32, %c0_i32_0 : i32, i32
  }
  func.func @transform_1(%arg0: i32) -> (i32, i32) {
    %c0_i32 = arith.constant 0 : i32
    %c0_i32_0 = arith.constant 0 : i32
    %c0_i32_1 = arith.constant 0 : i32
    return %c0_i32, %c0_i32_0 : i32, i32
  }
  func.func @transform_2(%arg0: i32) -> (i32, i32) {
    %c0_i32 = arith.constant 0 : i32
    %c0_i32_0 = arith.constant 0 : i32
    %c0_i32_1 = arith.constant 0 : i32
    return %c0_i32, %c0_i32_0 : i32, i32
  }
  func.func @transform_3(%arg0: i32) -> (i32, i32) {
    %c0_i32 = arith.constant 0 : i32
    %c0_i32_0 = arith.constant 0 : i32
    %c0_i32_1 = arith.constant 0 : i32
    return %c0_i32, %c0_i32_0 : i32, i32
  }
}

module attributes {stable_mosaic.version = 11 : i64} {
  func.func @_stem_pool_kernel(%arg0: i32, %arg1: i32, %arg2: memref<1x1x198x4xbf16, #tpu.memory_space<vmem>>, %arg3: memref<9x4x128xbf16, #tpu.memory_space<vmem>>, %arg4: memref<1x128xf32, #tpu.memory_space<vmem>>, %arg5: memref<1x1x128xf32, #tpu.memory_space<vmem>>, %arg6: memref<1x128xf32, #tpu.memory_space<vmem>>) attributes {dimension_semantics = [#tpu.dimension_semantics<parallel>, #tpu.dimension_semantics<arbitrary>], iteration_bounds = array<i64: 2, 2>, scalar_prefetch = 0 : i64, scratch_operands = 1 : i64, tpu.core_type = #tpu.core_type<tc>, window_params = [{transform_indices = @transform_0, window_bounds = array<i64: 1, 1, 198, 4>}, {pipeline_mode = #tpu.pipeline_mode<synchronous>, transform_indices = @transform_1, window_bounds = array<i64: 9, 4, 128>}, {pipeline_mode = #tpu.pipeline_mode<synchronous>, transform_indices = @transform_2, window_bounds = array<i64: 1, 128>}, {transform_indices = @transform_3, window_bounds = array<i64: 1, 1, 128>}]} {
    %c0_i32 = arith.constant 0 : i32
    %0 = arith.cmpi eq, %arg1, %c0_i32 : i32
    %1 = arith.extui %0 : i1 to i32
    %c0_i32_0 = arith.constant 0 : i32
    %2 = arith.cmpi ne, %1, %c0_i32_0 : i32
    scf.if %2 {
      %cst_47 = arith.constant 0.000000e+00 : f32
      %91 = vector.broadcast %cst_47 : f32 to vector<1x128xf32>
      %c0_48 = arith.constant 0 : index
      %c0_49 = arith.constant 0 : index
      %92 = vector.load %arg6[%c0_48, %c0_49] : memref<1x128xf32, #tpu.memory_space<vmem>>, vector<1x128xf32>
      tpu.vector_store %arg6[%c0_48, %c0_49], %91 {strides = array<i32>} : memref<1x128xf32, #tpu.memory_space<vmem>>, vector<1x128xf32>,
    } else {
    }
    %c0 = arith.constant 0 : index
    %c0_1 = arith.constant 0 : index
    %c0_2 = arith.constant 0 : index
    %c0_3 = arith.constant 0 : index
    %3 = vector.load %arg2[%c0, %c0_1, %c0_2, %c0_3] : memref<1x1x198x4xbf16, #tpu.memory_space<vmem>>, vector<1x1x198x4xbf16>
    %4 = vector.shape_cast %3 : vector<1x1x198x4xbf16> to vector<198x4xbf16>
    %cst = arith.constant 0.000000e+00 : f32
    %5 = vector.broadcast %cst : f32 to vector<144x128xf32>
    %6 = vector.extract_strided_slice %4 {offsets = [0, 0], sizes = [144, 4], strides = [1, 1]} : vector<198x4xbf16> to vector<144x4xbf16>
    %c0_4 = arith.constant 0 : index
    %c0_5 = arith.constant 0 : index
    %c0_6 = arith.constant 0 : index
    %7 = vector.load %arg3[%c0_4, %c0_5, %c0_6] : memref<9x4x128xbf16, #tpu.memory_space<vmem>>, vector<1x4x128xbf16>
    %8 = vector.shape_cast %7 : vector<1x4x128xbf16> to vector<4x128xbf16>
    %cst_7 = arith.constant dense<0.000000e+00> : vector<144x128xf32>
    %9 = tpu.matmul %6, %8, %cst_7 {dimension_numbers = #tpu.dot_dimension_numbers<[1], [0], [0], [1], [0, 0, 1, 1], [], []>} : vector<144x4xbf16>, vector<4x128xbf16>, vector<144x128xf32> -> vector<144x128xf32>
    %10 = arith.addf %5, %9 : vector<144x128xf32>
    %11 = vector.extract_strided_slice %4 {offsets = [1, 0], sizes = [144, 4], strides = [1, 1]} : vector<198x4xbf16> to vector<144x4xbf16>
    %c1 = arith.constant 1 : index
    %c0_8 = arith.constant 0 : index
    %c0_9 = arith.constant 0 : index
    %12 = vector.load %arg3[%c1, %c0_8, %c0_9] : memref<9x4x128xbf16, #tpu.memory_space<vmem>>, vector<1x4x128xbf16>
    %13 = vector.shape_cast %12 : vector<1x4x128xbf16> to vector<4x128xbf16>
    %cst_10 = arith.constant dense<0.000000e+00> : vector<144x128xf32>
    %14 = tpu.matmul %11, %13, %cst_10 {dimension_numbers = #tpu.dot_dimension_numbers<[1], [0], [0], [1], [0, 0, 1, 1], [], []>} : vector<144x4xbf16>, vector<4x128xbf16>, vector<144x128xf32> -> vector<144x128xf32>
    %15 = arith.addf %10, %14 : vector<144x128xf32>
    %16 = vector.extract_strided_slice %4 {offsets = [2, 0], sizes = [144, 4], strides = [1, 1]} : vector<198x4xbf16> to vector<144x4xbf16>
    %c2 = arith.constant 2 : index
    %c0_11 = arith.constant 0 : index
    %c0_12 = arith.constant 0 : index
    %17 = vector.load %arg3[%c2, %c0_11, %c0_12] : memref<9x4x128xbf16, #tpu.memory_space<vmem>>, vector<1x4x128xbf16>
    %18 = vector.shape_cast %17 : vector<1x4x128xbf16> to vector<4x128xbf16>
    %cst_13 = arith.constant dense<0.000000e+00> : vector<144x128xf32>
    %19 = tpu.matmul %16, %18, %cst_13 {dimension_numbers = #tpu.dot_dimension_numbers<[1], [0], [0], [1], [0, 0, 1, 1], [], []>} : vector<144x4xbf16>, vector<4x128xbf16>, vector<144x128xf32> -> vector<144x128xf32>
    %20 = arith.addf %15, %19 : vector<144x128xf32>
    %21 = vector.extract_strided_slice %4 {offsets = [18, 0], sizes = [144, 4], strides = [1, 1]} : vector<198x4xbf16> to vector<144x4xbf16>
    %c3 = arith.constant 3 : index
    %c0_14 = arith.constant 0 : index
    %c0_15 = arith.constant 0 : index
    %22 = vector.load %arg3[%c3, %c0_14, %c0_15] : memref<9x4x128xbf16, #tpu.memory_space<vmem>>, vector<1x4x128xbf16>
    %23 = vector.shape_cast %22 : vector<1x4x128xbf16> to vector<4x128xbf16>
    %cst_16 = arith.constant dense<0.000000e+00> : vector<144x128xf32>
    %24 = tpu.matmul %21, %23, %cst_16 {dimension_numbers = #tpu.dot_dimension_numbers<[1], [0], [0], [1], [0, 0, 1, 1], [], []>} : vector<144x4xbf16>, vector<4x128xbf16>, vector<144x128xf32> -> vector<144x128xf32>
    %25 = arith.addf %20, %24 : vector<144x128xf32>
    %26 = vector.extract_strided_slice %4 {offsets = [19, 0], sizes = [144, 4], strides = [1, 1]} : vector<198x4xbf16> to vector<144x4xbf16>
    %c4 = arith.constant 4 : index
    %c0_17 = arith.constant 0 : index
    %c0_18 = arith.constant 0 : index
    %27 = vector.load %arg3[%c4, %c0_17, %c0_18] : memref<9x4x128xbf16, #tpu.memory_space<vmem>>, vector<1x4x128xbf16>
    %28 = vector.shape_cast %27 : vector<1x4x128xbf16> to vector<4x128xbf16>
    %cst_19 = arith.constant dense<0.000000e+00> : vector<144x128xf32>
    %29 = tpu.matmul %26, %28, %cst_19 {dimension_numbers = #tpu.dot_dimension_numbers<[1], [0], [0], [1], [0, 0, 1, 1], [], []>} : vector<144x4xbf16>, vector<4x128xbf16>, vector<144x128xf32> -> vector<144x128xf32>
    %30 = arith.addf %25, %29 : vector<144x128xf32>
    %31 = vector.extract_strided_slice %4 {offsets = [20, 0], sizes = [144, 4], strides = [1, 1]} : vector<198x4xbf16> to vector<144x4xbf16>
    %c5 = arith.constant 5 : index
    %c0_20 = arith.constant 0 : index
    %c0_21 = arith.constant 0 : index
    %32 = vector.load %arg3[%c5, %c0_20, %c0_21] : memref<9x4x128xbf16, #tpu.memory_space<vmem>>, vector<1x4x128xbf16>
    %33 = vector.shape_cast %32 : vector<1x4x128xbf16> to vector<4x128xbf16>
    %cst_22 = arith.constant dense<0.000000e+00> : vector<144x128xf32>
    %34 = tpu.matmul %31, %33, %cst_22 {dimension_numbers = #tpu.dot_dimension_numbers<[1], [0], [0], [1], [0, 0, 1, 1], [], []>} : vector<144x4xbf16>, vector<4x128xbf16>, vector<144x128xf32> -> vector<144x128xf32>
    %35 = arith.addf %30, %34 : vector<144x128xf32>
    %36 = vector.extract_strided_slice %4 {offsets = [36, 0], sizes = [144, 4], strides = [1, 1]} : vector<198x4xbf16> to vector<144x4xbf16>
    %c6 = arith.constant 6 : index
    %c0_23 = arith.constant 0 : index
    %c0_24 = arith.constant 0 : index
    %37 = vector.load %arg3[%c6, %c0_23, %c0_24] : memref<9x4x128xbf16, #tpu.memory_space<vmem>>, vector<1x4x128xbf16>
    %38 = vector.shape_cast %37 : vector<1x4x128xbf16> to vector<4x128xbf16>
    %cst_25 = arith.constant dense<0.000000e+00> : vector<144x128xf32>
    %39 = tpu.matmul %36, %38, %cst_25 {dimension_numbers = #tpu.dot_dimension_numbers<[1], [0], [0], [1], [0, 0, 1, 1], [], []>} : vector<144x4xbf16>, vector<4x128xbf16>, vector<144x128xf32> -> vector<144x128xf32>
    %40 = arith.addf %35, %39 : vector<144x128xf32>
    %41 = vector.extract_strided_slice %4 {offsets = [37, 0], sizes = [144, 4], strides = [1, 1]} : vector<198x4xbf16> to vector<144x4xbf16>
    %c7 = arith.constant 7 : index
    %c0_26 = arith.constant 0 : index
    %c0_27 = arith.constant 0 : index
    %42 = vector.load %arg3[%c7, %c0_26, %c0_27] : memref<9x4x128xbf16, #tpu.memory_space<vmem>>, vector<1x4x128xbf16>
    %43 = vector.shape_cast %42 : vector<1x4x128xbf16> to vector<4x128xbf16>
    %cst_28 = arith.constant dense<0.000000e+00> : vector<144x128xf32>
    %44 = tpu.matmul %41, %43, %cst_28 {dimension_numbers = #tpu.dot_dimension_numbers<[1], [0], [0], [1], [0, 0, 1, 1], [], []>} : vector<144x4xbf16>, vector<4x128xbf16>, vector<144x128xf32> -> vector<144x128xf32>
    %45 = arith.addf %40, %44 : vector<144x128xf32>
    %46 = vector.extract_strided_slice %4 {offsets = [38, 0], sizes = [144, 4], strides = [1, 1]} : vector<198x4xbf16> to vector<144x4xbf16>
    %c8 = arith.constant 8 : index
    %c0_29 = arith.constant 0 : index
    %c0_30 = arith.constant 0 : index
    %47 = vector.load %arg3[%c8, %c0_29, %c0_30] : memref<9x4x128xbf16, #tpu.memory_space<vmem>>, vector<1x4x128xbf16>
    %48 = vector.shape_cast %47 : vector<1x4x128xbf16> to vector<4x128xbf16>
    %cst_31 = arith.constant dense<0.000000e+00> : vector<144x128xf32>
    %49 = tpu.matmul %46, %48, %cst_31 {dimension_numbers = #tpu.dot_dimension_numbers<[1], [0], [0], [1], [0, 0, 1, 1], [], []>} : vector<144x4xbf16>, vector<4x128xbf16>, vector<144x128xf32> -> vector<144x128xf32>
    %50 = arith.addf %45, %49 : vector<144x128xf32>
    %c0_32 = arith.constant 0 : index
    %c0_33 = arith.constant 0 : index
    %51 = vector.load %arg4[%c0_32, %c0_33] : memref<1x128xf32, #tpu.memory_space<vmem>>, vector<1x128xf32>
    %52 = vector.broadcast %51 : vector<1x128xf32> to vector<144x128xf32>
    %53 = arith.addf %50, %52 : vector<144x128xf32>
    %54 = arith.negf %53 : vector<144x128xf32>
    %55 = math.exp %54 : vector<144x128xf32>
    %cst_34 = arith.constant 1.000000e+00 : f32
    %56 = vector.broadcast %cst_34 : f32 to vector<144x128xf32>
    %57 = arith.addf %56, %55 : vector<144x128xf32>
    %58 = arith.divf %56, %57 : vector<144x128xf32>
    %59 = arith.mulf %53, %58 : vector<144x128xf32>
    %60 = tpu.iota {dimensions = array<i32: 0>} : vector<144x1xi32>
    %c18_i32 = arith.constant 18 : i32
    %c0_i32_35 = arith.constant 0 : i32
    %61 = arith.cmpi eq, %c18_i32, %c0_i32_35 : i32
    %c1_i32 = arith.constant 1 : i32
    %62 = arith.select %61, %c1_i32, %c18_i32 : i32
    %63 = vector.broadcast %62 : i32 to vector<144x1xi32>
    %64 = arith.remsi %60, %63 : vector<144x1xi32>
    %c0_i32_36 = arith.constant 0 : i32
    %65 = vector.broadcast %c0_i32_36 : i32 to vector<144x1xi32>
    %66 = arith.cmpi ne, %64, %65 : vector<144x1xi32>
    %c0_i32_37 = arith.constant 0 : i32
    %67 = vector.broadcast %c0_i32_37 : i32 to vector<144x1xi32>
    %68 = arith.cmpi slt, %64, %67 : vector<144x1xi32>
    %c0_i32_38 = arith.constant 0 : i32
    %69 = arith.cmpi slt, %62, %c0_i32_38 : i32
    %70 = vector.broadcast %69 : i1 to vector<144x1xi1>
    %71 = vector.broadcast %70 : vector<144x1xi1> to vector<144x1xi1>
    %72 = arith.xori %68, %71 : vector<144x1xi1>
    %73 = arith.andi %72, %66 : vector<144x1xi1>
    %74 = vector.broadcast %62 : i32 to vector<144x1xi32>
    %75 = arith.addi %64, %74 : vector<144x1xi32>
    %76 = arith.select %73, %75, %64 : vector<144x1xi1>, vector<144x1xi32>
    %c16_i32 = arith.constant 16 : i32
    %77 = vector.broadcast %c16_i32 : i32 to vector<144x1xi32>
    %78 = arith.cmpi slt, %76, %77 : vector<144x1xi32>
    %cst_39 = arith.constant 0.000000e+00 : f32
    %79 = vector.shape_cast %78 : vector<144x1xi1> to vector<144x1xi1>
    %80 = vector.broadcast %79 : vector<144x1xi1> to vector<144x128xi1>
    %81 = vector.broadcast %cst_39 : f32 to vector<144x128xf32>
    %82 = arith.select %80, %59, %81 : vector<144x128xi1>, vector<144x128xf32>
    %c0_40 = arith.constant 0 : index
    %c0_41 = arith.constant 0 : index
    %83 = vector.load %arg6[%c0_40, %c0_41] : memref<1x128xf32, #tpu.memory_space<vmem>>, vector<1x128xf32>
    %cst_42 = arith.constant dense<0.000000e+00> : vector<128xf32>
    %84 = vector.multi_reduction <add>, %82, %cst_42 [0] : vector<144x128xf32> to vector<128xf32>
    %85 = vector.shape_cast %84 : vector<128xf32> to vector<1x128xf32>
    %86 = arith.addf %83, %85 : vector<1x128xf32>
    %c0_43 = arith.constant 0 : index
    %c0_44 = arith.constant 0 : index
    %87 = vector.load %arg6[%c0_43, %c0_44] : memref<1x128xf32, #tpu.memory_space<vmem>>, vector<1x128xf32>
    tpu.vector_store %arg6[%c0_43, %c0_44], %86 {strides = array<i32>} : memref<1x128xf32, #tpu.memory_space<vmem>>, vector<1x128xf32>,
    %c1_i32_45 = arith.constant 1 : i32
    %88 = arith.cmpi eq, %arg1, %c1_i32_45 : i32
    %89 = arith.extui %88 : i1 to i32
    %c0_i32_46 = arith.constant 0 : i32
    %90 = arith.cmpi ne, %89, %c0_i32_46 : i32
    scf.if %90 {
      %c0_47 = arith.constant 0 : index
      %c0_48 = arith.constant 0 : index
      %91 = vector.load %arg6[%c0_47, %c0_48] : memref<1x128xf32, #tpu.memory_space<vmem>>, vector<1x128xf32>
      %cst_49 = arith.constant 3.906250e-03 : f32
      %92 = vector.broadcast %cst_49 : f32 to vector<1x128xf32>
      %93 = arith.mulf %91, %92 : vector<1x128xf32>
      %94 = vector.shape_cast %93 : vector<1x128xf32> to vector<1x1x128xf32>
      %c0_50 = arith.constant 0 : index
      %c0_51 = arith.constant 0 : index
      %c0_52 = arith.constant 0 : index
      %95 = vector.load %arg5[%c0_50, %c0_51, %c0_52] : memref<1x1x128xf32, #tpu.memory_space<vmem>>, vector<1x1x128xf32>
      tpu.vector_store %arg5[%c0_50, %c0_51, %c0_52], %94 {strides = array<i32>} : memref<1x1x128xf32, #tpu.memory_space<vmem>>, vector<1x1x128xf32>,
    } else {
    }
    return
  }
  func.func @transform_0(%arg0: i32, %arg1: i32) -> (i32, i32, i32, i32) {
    %c0_i32 = arith.constant 0 : i32
    %c0_i32_0 = arith.constant 0 : i32
    %c0_i32_1 = arith.constant 0 : i32
    return %arg0, %arg1, %c0_i32, %c0_i32_0 : i32, i32, i32, i32
  }
  func.func @transform_1(%arg0: i32, %arg1: i32) -> (i32, i32, i32) {
    %c0_i32 = arith.constant 0 : i32
    %c0_i32_0 = arith.constant 0 : i32
    %c0_i32_1 = arith.constant 0 : i32
    %c0_i32_2 = arith.constant 0 : i32
    return %c0_i32, %c0_i32_0, %c0_i32_1 : i32, i32, i32
  }
  func.func @transform_2(%arg0: i32, %arg1: i32) -> (i32, i32) {
    %c0_i32 = arith.constant 0 : i32
    %c0_i32_0 = arith.constant 0 : i32
    %c0_i32_1 = arith.constant 0 : i32
    return %c0_i32, %c0_i32_0 : i32, i32
  }
  func.func @transform_3(%arg0: i32, %arg1: i32) -> (i32, i32, i32) {
    %c0_i32 = arith.constant 0 : i32
    %c0_i32_0 = arith.constant 0 : i32
    %c0_i32_1 = arith.constant 0 : i32
    return %arg0, %c0_i32, %c0_i32_0 : i32, i32, i32
  }
}

</mosaic_0001>

<llo_original>
// kernel: mask_classifier_forward.3
$region0: #{mask_classifier_forward.3}
  #allocation0 [shape = 'u32[]', space=smem, size = 0x4, offset = 0x4, fixed_abs, tag = 'smem constant byte address 0x4 - core index']
  #allocation1 [shape = 'u32[144,128]{1,0:T(1,128)}', space=vmem, size = 0x12000, scoped, tag = 'internal scratch']
  %s0 = inlined_call_operand.vmem [shape: f32[2,128], index: 0, kind: input, shape index: {}]
  %s1 = inlined_call_operand.vmem [shape: f32[128,5], index: 1, kind: input, shape index: {}]
  %s2 = inlined_call_operand.vmem [shape: f32[1,5], index: 2, kind: input, shape index: {}]
  %s3 = inlined_call_operand.hbm [shape: f32[2,5], index: 3, kind: output, shape index: {}]
  %s4 = sld [smem:[#allocation0]]
  $region22: #{mask_classifier_forward.3} parent=0
    _
  %s6 = ssub.s32 1, %s4
  %s7 = scalar_select 0, %s6, %s4
  $region1: #{mask_classifier_forward.3} parent=0
    #allocation2 [shape = 'u8[1024]{0}', space=vmem, size = 0x400, scoped, tag = 'output window, operand 0, single buffered']
    #allocation3 [shape = 's32[1]{0}', space=sflag, size = 0x4, scoped, tag = 'scoped memory for mask_classifier_forward.3']
    %8 = vsyncpa [#allocation3], 0
    // Predicated region
    $region2: #{mask_classifier_forward.3} parent=1 // pred_check
      _
    $region3: #{mask_classifier_forward.3} parent=1 // pred_check_branch
      %10 = sbr.rel (0) target = $region5
    $region4: #{mask_classifier_forward.3} parent=1 // pred_region
      _
    $region5: #{mask_classifier_forward.3} parent=1 // pred_fallthru
      _
    // Predicated region
    $region6: #{mask_classifier_forward.3} parent=1 // pred_check
      _
    $region7: #{mask_classifier_forward.3} parent=1 // pred_check_branch
      %12 = sbr.rel (0) target = $region9
    $region8: #{mask_classifier_forward.3} parent=1 // pred_region
      _
    $region9: #{mask_classifier_forward.3} parent=1 // pred_fallthru
      _
    // Predicated region
    $region10: #{mask_classifier_forward.3} parent=1 // pred_check
      _
    $region11: #{mask_classifier_forward.3} parent=1 // pred_check_branch
      %14 = sbr.rel (0) target = $region13
    $region12: #{mask_classifier_forward.3} parent=1 // pred_region
      _
    $region13: #{mask_classifier_forward.3} parent=1 // pred_fallthru
      _
    %v15 = vld [vmem:[%s0] sm:$0x3]
    %v16 = vld [vmem:[%s1] sm:$0xff]
    %v17 = vld [vmem:[%s1 + $0x8] sm:$0xff]
    %v18 = vld [vmem:[%s1 + $0x10] sm:$0xff]
    %v19 = vld [vmem:[%s1 + $0x18] sm:$0xff]
    %v20 = vld [vmem:[%s1 + $0x20] sm:$0xff]
    %v21 = vld [vmem:[%s1 + $0x28] sm:$0xff]
    %v22 = vld [vmem:[%s1 + $0x30] sm:$0xff]
    %v23 = vld [vmem:[%s1 + $0x38] sm:$0xff]
    %v24 = vld [vmem:[%s1 + $0x40] sm:$0xff]
    %v25 = vld [vmem:[%s1 + $0x48] sm:$0xff]
    %v26 = vld [vmem:[%s1 + $0x50] sm:$0xff]
    %v27 = vld [vmem:[%s1 + $0x58] sm:$0xff]
    %v28 = vld [vmem:[%s1 + $0x60] sm:$0xff]
    %v29 = vld [vmem:[%s1 + $0x68] sm:$0xff]
    %v30 = vld [vmem:[%s1 + $0x70] sm:$0xff]
    %v31 = vld [vmem:[%s1 + $0x78] sm:$0xff]
    %v32 = vld [vmem:[%s2] sm:$0x1]
    %v34 = vlaneseq
    %v35 = vshrl.u32 %v34, 7
    %v36 = vsub.s32 0, %v35
    %v37 = vrot.slane %v32, %v36
    %39 = vmatprep.subr.mxu0 0.0
    %40 = vmatpush1.msra.mxu0 %v16
    %41 = vmatprep.subr.mxu0 0.0
    %42 = vmatpush1.msra.mxu0 %v17
    %43 = vmatprep.subr.mxu0 0.0
    %44 = vmatpush1.msra.mxu0 %v18
    %45 = vmatprep.subr.mxu0 0.0
    %46 = vmatpush1.msra.mxu0 %v19
    %47 = vmatprep.subr.mxu0 0.0
    %48 = vmatpush1.msra.mxu0 %v20
    %49 = vmatprep.subr.mxu0 0.0
    %50 = vmatpush1.msra.mxu0 %v21
    %51 = vmatprep.subr.mxu0 0.0
    %52 = vmatpush1.msra.mxu0 %v22
    %53 = vmatprep.subr.mxu0 0.0
    %54 = vmatpush1.msra.mxu0 %v23
    %55 = vmatprep.subr.mxu0 0.0
    %56 = vmatpush1.msra.mxu0 %v24
    %57 = vmatprep.subr.mxu0 0.0
    %58 = vmatpush1.msra.mxu0 %v25
    %59 = vmatprep.subr.mxu0 0.0
    %60 = vmatpush1.msra.mxu0 %v26
    %61 = vmatprep.subr.mxu0 0.0
    %62 = vmatpush1.msra.mxu0 %v27
    %63 = vmatprep.subr.mxu0 0.0
    %64 = vmatpush1.msra.mxu0 %v28
    %65 = vmatprep.subr.mxu0 0.0
    %66 = vmatpush1.msra.mxu0 %v29
    %67 = vmatprep.subr.mxu0 0.0
    %68 = vmatpush1.msra.mxu0 %v30
    %69 = vmatprep.subr.mxu0 0.0
    %70 = vmatpush1.msra.mxu0 %v31
    %71 = vmatprep.subr.mxu0 0.0
    %72 = vmatpush1.msra.mxu0 0.0
    %73 = vmatprep.subr.mxu0 0.0
    %74 = vmatpush1.msra.mxu0 0.0
    %75 = vmatprep.subr.mxu0 0.0
    %76 = vmatpush1.msra.mxu0 0.0
    %77 = vmatprep.subr.mxu0 0.0
    %78 = vmatpush1.msra.mxu0 0.0
    %79 = vmatprep.subr.mxu0 0.0
    %80 = vmatpush1.msra.mxu0 0.0
    %81 = vmatprep.subr.mxu0 0.0
    %82 = vmatpush1.msra.mxu0 0.0
    %83 = vmatprep.subr.mxu0 0.0
    %84 = vmatpush1.msra.mxu0 0.0
    %85 = vmatprep.subr.mxu0 0.0
    %86 = vmatpush1.msra.mxu0 0.0
    %87 = vmatprep.subr.mxu0 0.0
    %88 = vmatpush1.msra.mxu0 0.0
    %89 = vmatprep.subr.mxu0 0.0
    %90 = vmatpush1.msra.mxu0 0.0
    %91 = vmatprep.subr.mxu0 0.0
    %92 = vmatpush1.msra.mxu0 0.0
    %93 = vmatprep.subr.mxu0 0.0
    %94 = vmatpush1.msra.mxu0 0.0
    %95 = vmatprep.subr.mxu0 0.0
    %96 = vmatpush1.msra.mxu0 0.0
    %97 = vmatprep.subr.mxu0 0.0
    %98 = vmatpush1.msra.mxu0 0.0
    %99 = vmatprep.subr.mxu0 0.0
    %100 = vmatpush1.msra.mxu0 0.0
    %101 = vmatprep.subr.mxu0 0.0
    %102 = vmatpush1.msra.mxu0 0.0
    %103 = vmatprep.mubr.f32.mxu0 0.0
    %104 = vmatmul.mubr.f32.gmra.mrb[0].mxu0 %v15
    %v105 = vpop.f32.mrb[0].mxu0
    %v106 = vadd.f32 %v37, %v105
    %v107 = vpop.f32.mrb[0].mxu0
    %108 = vdwg.mxu0
    %vm109 = vcmask 33792
    %110 = vst.msk [vmem:[#allocation2] sm:$0x3] %vm109, %v106
    // Predicated region
    $region14: #{mask_classifier_forward.3} parent=1 // pred_check
      _
    $region15: #{mask_classifier_forward.3} parent=1 // pred_check_branch
      %112 = sbr.rel (0) target = $region17
    $region16: #{mask_classifier_forward.3} parent=1 // pred_region
      %s114 = ssub.s32 32, 32
      %115 = vsyncadd [#allocation3], %s114
      %s117 = sshll.u32 [#allocation2], 4
      %s118 = int_to_ptr.vmem [resolvable:$true] %s117
      %120 = dma.vmem_to_hbm [thread:$0]  %s118, 32, %s3, [#allocation3]
    $region17: #{mask_classifier_forward.3} parent=1 // pred_fallthru
      _
    // Predicated region
    $region18: #{mask_classifier_forward.3} parent=1 // pred_check
      _
    $region19: #{mask_classifier_forward.3} parent=1 // pred_check_branch
      %122 = sbr.rel (0) target = $region21
    $region20: #{mask_classifier_forward.3} parent=1 // pred_region
      %123 = dma.done [#allocation3], 32
    $region21: #{mask_classifier_forward.3} parent=1 // pred_fallthru
      _
    %124 = vsyncpa [#allocation3], 1

// kernel: mask_classifier_forward.2
$region0: #{mask_classifier_forward.2}
  #allocation0 [shape = 'u32[]', space=smem, size = 0x4, offset = 0x4, fixed_abs, tag = 'smem constant byte address 0x4 - core index']
  #allocation1 [shape = 'u32[144,128]{1,0:T(1,128)}', space=vmem, size = 0x12000, scoped, tag = 'internal scratch']
  #allocation2 [shape = 'f32[1,128]{1,0:T(1,128)}', space=vmem, size = 0x200, scoped, tag = 'scratch operand']
  %s0 = inlined_call_operand.vmem [shape: bf16[2,2,198,4], index: 0, kind: input, shape index: {}]
  %s1 = inlined_call_operand.vmem [shape: bf16[9,4,128], index: 1, kind: input, shape index: {}]
  %s2 = inlined_call_operand.vmem [shape: f32[1,128], index: 2, kind: input, shape index: {}]
  %s3 = inlined_call_operand.vmem [shape: f32[2,1,128], index: 3, kind: output, shape index: {}]
  %s4 = sld [smem:[#allocation0]]
  $region53: #{mask_classifier_forward.2} parent=0
    _
  %s6 = ssub.s32 1, %s4
  %s7 = scalar_select 0, %s6, %s4
  loop: start=0, step=1, limit=6
  $region2: #{mask_classifier_forward.2} parent=0 // loop_pre_header
    _
  $region3: #{mask_classifier_forward.2} parent=0 // loop_header
    %s9 = sphi 0, %s13
    %p10 = scmp.ge.s32.totalorder %s9, 6
    %s16 = sphi 0, %s28
    %s17 = sphi 0, %s24
    %s18 = sphi 0, %s16
    %s19 = sphi 0, %s17
    %s20 = sphi 0, %s18
    %s21 = sphi 0, %s19
    %s33 = sphi 0, %s35
    %s36 = sphi 0, %s33
    %s37 = sphi 0, %s36
    %s53 = sphi 0, %s37
    %s57 = sphi 0, %s57
    %s59 = sphi 0, %s57
    %s60 = sphi 0, %s59
    %s74 = sphi 0, %s60
    %s78 = sphi 0, %s78
    %s80 = sphi 0, %s78
    %s81 = sphi 0, %s80
    %s95 = sphi 0, %s81
    %s101 = sphi 0, %s103
    %s104 = sphi 0, %s101
    %s105 = sphi 0, %s104
    %s121 = sphi 0, %s105
  $region4: #{mask_classifier_forward.2} parent=0 // loop_header_branch
    %12 = sbr.rel (%p10) target = $region8
  $region5: #{mask_classifier_forward.2} parent=0 // loop_body
    %s14 = ssub.s32 %s9, 1
    %s15 = ssub.s32 %s9, 2
    %s22 = sadd.s32 1, %s17
    %p23 = scmp.ge.s32.totalorder %s22, 2
    %s24 = scalar_select %p23, 0, %s22
    %s25 = sadd.s32 1, %s16
    %s26 = scalar_select %p23, %s25, %s16
    %p27 = scmp.ge.s32.totalorder %s26, 2
    %s28 = scalar_select %p27, 0, %s26
    %s29 = ssub.s32 %s16, %s28
    %s30 = ssub.s32 %s17, %s24
    %s31 = sor.u32 %s29, %s30
    %p32 = scmp.eq.s32.totalorder %s31, 0
    %s34 = sadd.s32 %s33, 1
    %s35 = scalar_select %p32, %s33, %s34
    %p38 = pneg %p32
    %p39 = scmp.eq.s32.totalorder %s9, 3
    %p40 = por %p38, %p39
    %p41 = scmp.ne.s32.totalorder %s33, %s36
    %p42 = scmp.eq.s32.totalorder %s9, 0
    %p43 = por %p41, %p42
    %p44 = scmp.ne.s32.totalorder %s33, %s36
    %p45 = scmp.eq.s32.totalorder %s14, 3
    %p46 = por %p44, %p45
    %p47 = scmp.ne.s32.totalorder %s36, %s37
    %p48 = scmp.eq.s32.totalorder %s14, 0
    %p49 = por %p47, %p48
    %p50 = scmp.ne.s32.totalorder %s36, %s37
    %p51 = scmp.eq.s32.totalorder %s15, 3
    %p52 = por %p50, %p51
    %p54 = scmp.ne.s32.totalorder %s37, %s53
    %p55 = scmp.eq.s32.totalorder %s15, 0
    %p56 = por %p54, %p55
    %s58 = sadd.s32 %s57, 1
    %p61 = scmp.eq.s32.totalorder %s9, 3
    %p62 = scmp.ne.s32.totalorder %s57, %s59
    %p63 = scmp.eq.s32.totalorder %s9, 0
    %p64 = por %p62, %p63
    %p65 = scmp.ne.s32.totalorder %s57, %s59
    %p66 = scmp.eq.s32.totalorder %s14, 3
    %p67 = por %p65, %p66
    %p68 = scmp.ne.s32.totalorder %s59, %s60
    %p69 = scmp.eq.s32.totalorder %s14, 0
    %p70 = por %p68, %p69
    %p71 = scmp.ne.s32.totalorder %s59, %s60
    %p72 = scmp.eq.s32.totalorder %s15, 3
    %p73 = por %p71, %p72
    %p75 = scmp.ne.s32.totalorder %s60, %s74
    %p76 = scmp.eq.s32.totalorder %s15, 0
    %p77 = por %p75, %p76
    %s79 = sadd.s32 %s78, 1
    %p82 = scmp.eq.s32.totalorder %s9, 3
    %p83 = scmp.ne.s32.totalorder %s78, %s80
    %p84 = scmp.eq.s32.totalorder %s9, 0
    %p85 = por %p83, %p84
    %p86 = scmp.ne.s32.totalorder %s78, %s80
    %p87 = scmp.eq.s32.totalorder %s14, 3
    %p88 = por %p86, %p87
    %p89 = scmp.ne.s32.totalorder %s80, %s81
    %p90 = scmp.eq.s32.totalorder %s14, 0
    %p91 = por %p89, %p90
    %p92 = scmp.ne.s32.totalorder %s80, %s81
    %p93 = scmp.eq.s32.totalorder %s15, 3
    %p94 = por %p92, %p93
    %p96 = scmp.ne.s32.totalorder %s81, %s95
    %p97 = scmp.eq.s32.totalorder %s15, 0
    %p98 = por %p96, %p97
    %s99 = ssub.s32 %s16, %s28
    %p100 = scmp.eq.s32.totalorder %s99, 0
    %s102 = sadd.s32 %s101, 1
    %s103 = scalar_select %p100, %s101, %s102
    %p106 = pneg %p100
    %p107 = scmp.eq.s32.totalorder %s9, 3
    %p108 = por %p106, %p107
    %p109 = scmp.ne.s32.totalorder %s101, %s104
    %p110 = scmp.eq.s32.totalorder %s9, 0
    %p111 = por %p109, %p110
    %p112 = scmp.ne.s32.totalorder %s101, %s104
    %p113 = scmp.eq.s32.totalorder %s14, 3
    %p114 = por %p112, %p113
    %p115 = scmp.ne.s32.totalorder %s104, %s105
    %p116 = scmp.eq.s32.totalorder %s14, 0
    %p117 = por %p115, %p116
    %p118 = scmp.ne.s32.totalorder %s104, %s105
    %p119 = scmp.eq.s32.totalorder %s15, 3
    %p120 = por %p118, %p119
    %p122 = scmp.ne.s32.totalorder %s105, %s121
    %p123 = scmp.eq.s32.totalorder %s15, 0
    %p124 = por %p122, %p123
    %p125 = scmp.le.s32.totalorder 1, %s9
    %p126 = scmp.lt.s32.totalorder %s9, 5
    %p127 = pnand %p125, %p126
    %p128 = pneg %p127
    // Predicated region
    $region9: #{mask_classifier_forward.2} parent=5 // pred_check
      _
    $region10: #{mask_classifier_forward.2} parent=5 // pred_check_branch
      %130 = sbr.rel (%p127) target = $region12
    $region11: #{mask_classifier_forward.2} parent=5 // pred_region
      %s131 = ssub.s32 %s9, 1
      // Predicated region
      $region13: #{mask_classifier_forward.2} parent=11 // pred_check
        %p132 = pneg %p70
      $region14: #{mask_classifier_forward.2} parent=11 // pred_check_branch
        %134 = sbr.rel (%p132) target = $region16
      $region15: #{mask_classifier_forward.2} parent=11 // pred_region
        _
      $region16: #{mask_classifier_forward.2} parent=11 // pred_fallthru
        _
      // Predicated region
      $region17: #{mask_classifier_forward.2} parent=11 // pred_check
        %p135 = pneg %p91
      $region18: #{mask_classifier_forward.2} parent=11 // pred_check_branch
        %137 = sbr.rel (%p135) target = $region20
      $region19: #{mask_classifier_forward.2} parent=11 // pred_region
        _
      $region20: #{mask_classifier_forward.2} parent=11 // pred_fallthru
        _
    $region12: #{mask_classifier_forward.2} parent=5 // pred_fallthru
      _
    %p138 = scmp.lt.s32.totalorder %s9, 4
    // Predicated region
    $region21: #{mask_classifier_forward.2} parent=5 // pred_check
      %p139 = pneg %p138
    $region22: #{mask_classifier_forward.2} parent=5 // pred_check_branch
      %141 = sbr.rel (%p139) target = $region24
    $region23: #{mask_classifier_forward.2} parent=5 // pred_region
      // Predicated region
      $region25: #{mask_classifier_forward.2} parent=23 // pred_check
        %p142 = pneg %p43
      $region26: #{mask_classifier_forward.2} parent=23 // pred_check_branch
        %144 = sbr.rel (%p142) target = $region28
      $region27: #{mask_classifier_forward.2} parent=23 // pred_region
        %p145 = scmp.lt.s32.totalorder %s16, 1
        %s146 = scalar_select %p145, %s16, 1
        %p147 = scmp.lt.s32.totalorder %s17, 1
        %s148 = scalar_select %p147, %s17, 1
        %s149 = smul.addr %s148, 25
        %s150 = smul.addr %s146, 50
        %s151 = sadd.s32 %s149, %s150
        %s152 = smul.addr %s151, 4
        %s153 = scalar_lea.vmem %s0, %s152
      $region28: #{mask_classifier_forward.2} parent=23 // pred_fallthru
        _
    $region24: #{mask_classifier_forward.2} parent=5 // pred_fallthru
      _
    %p154 = scmp.le.s32.totalorder 1, %s9
    %p155 = scmp.lt.s32.totalorder %s9, 5
    %p156 = pnand %p154, %p155
    %p157 = pneg %p156
    // Predicated region
    $region29: #{mask_classifier_forward.2} parent=5 // pred_check
      _
    $region30: #{mask_classifier_forward.2} parent=5 // pred_check_branch
      %159 = sbr.rel (%p156) target = $region32
    $region31: #{mask_classifier_forward.2} parent=5 // pred_region
      %s160 = ssub.s32 %s9, 1
      %p161 = scmp.lt.s32.totalorder %s18, 1
      %s162 = scalar_select %p161, %s18, 1
      %p163 = scmp.lt.s32.totalorder %s19, 1
      %s164 = scalar_select %p163, %s19, 1
      %s165 = smul.addr %s164, 25
      %s166 = smul.addr %s162, 50
      %s167 = sadd.s32 %s165, %s166
      %s168 = smul.addr %s167, 4
      %s169 = scalar_lea.vmem %s0, %s168
      %p170 = pneg %p49
      %p171 = pneg %p46
      %p172 = pneg %p70
      %p173 = pneg %p67
      %p174 = pneg %p91
      %p175 = pneg %p88
      %p176 = pneg %p117
      %p177 = pneg %p114
      %p178 = scmp.lt.s32.totalorder %s18, 1
      %s179 = scalar_select %p178, %s18, 1
      %s180 = scalar_lea.vmem %s3, %s179
      %p181 = scmp.lt.s32.totalorder %s18, 1
      %s182 = scalar_select %p181, %s18, 1
      %p183 = scmp.lt.s32.totalorder %s19, 1
      %s184 = scalar_select %p183, %s19, 1
      %s185 = smul.addr %s184, 25
      %s186 = smul.addr %s182, 50
      %s187 = sadd.s32 %s185, %s186
      %s188 = smul.addr %s187, 4
      %s189 = scalar_lea.vmem %s0, %s188
      %p190 = scmp.lt.s32.totalorder %s18, 1
      %s191 = scalar_select %p190, %s18, 1
      %s192 = scalar_lea.vmem %s3, %s191
      %p194 = scmp.eq.s32.totalorder %s19, 0
      // Predicated region
      $region33: #{mask_classifier_forward.2} parent=31 // pred_check
        %p195 = pneg %p194
      $region34: #{mask_classifier_forward.2} parent=31 // pred_check_branch
        %197 = sbr.rel (%p195) target = $region36
      $region35: #{mask_classifier_forward.2} parent=31 // pred_region
        %198 = vst [vmem:[#allocation2] sm:$0x1] 0.0
      $region36: #{mask_classifier_forward.2} parent=31 // pred_fallthru
        _
      %v199 = vld [vmem:[%s189] sm:$0xf]
      %v200 = vld [vmem:[%s189 + $0x4] sm:$0xf]
      %v201 = vld [vmem:[%s189 + $0x8] sm:$0xf]
      %v202 = vld [vmem:[%s189 + $0xc] sm:$0xf]
      %v203 = vld [vmem:[%s189 + $0x10] sm:$0xf]
      %v204 = vld [vmem:[%s189 + $0x14] sm:$0xf]
      %v205 = vld [vmem:[%s189 + $0x18] sm:$0xf]
      %v206 = vld [vmem:[%s189 + $0x1c] sm:$0xf]
      %v207 = vld [vmem:[%s189 + $0x20] sm:$0xf]
      %v208 = vld [vmem:[%s189 + $0x24] sm:$0xf]
      %v209 = vld [vmem:[%s189 + $0x28] sm:$0xf]
      %v210 = vld [vmem:[%s189 + $0x2c] sm:$0xf]
      %v211 = vld [vmem:[%s189 + $0x30] sm:$0xf]
      %v212 = vld [vmem:[%s189 + $0x34] sm:$0xf]
      %v213 = vld [vmem:[%s189 + $0x38] sm:$0xf]
      %v214 = vld [vmem:[%s189 + $0x3c] sm:$0xf]
      %v215 = vld [vmem:[%s189 + $0x40] sm:$0xf]
      %v216 = vld [vmem:[%s189 + $0x44] sm:$0xf]
      %v217 = vld [vmem:[%s189 + $0x48] sm:$0xf]
      %v218 = vld [vmem:[%s189 + $0x4c] sm:$0xf]
      %v219 = vld [vmem:[%s189 + $0x50] sm:$0xf]
      %v220 = vld [vmem:[%s189 + $0x54] sm:$0xf]
      %v221 = vld [vmem:[%s189 + $0x58] sm:$0xf]
      %v222 = vld [vmem:[%s1] sm:$0x3]
      %s223 = scalar_lea.vmem %s1, 2
      %v224 = vld [vmem:[%s223] sm:$0x3]
      %v244 = vunpack.c.l.b16 %v199
      %v245 = vunpack.c.l.b16 %v200
      %v246 = vunpack.c.l.b16 %v201
      %v247 = vunpack.c.l.b16 %v202
      %v248 = vunpack.c.l.b16 %v203
      %v249 = vunpack.c.l.b16 %v204
      %v250 = vunpack.c.l.b16 %v205
      %v251 = vunpack.c.l.b16 %v206
      %v252 = vunpack.c.l.b16 %v207
      %v253 = vunpack.c.l.b16 %v208
      %v254 = vunpack.c.l.b16 %v209
      %v255 = vunpack.c.l.b16 %v210
      %v256 = vunpack.c.l.b16 %v211
      %v257 = vunpack.c.l.b16 %v212
      %v258 = vunpack.c.l.b16 %v213
      %v259 = vunpack.c.l.b16 %v214
      %v260 = vunpack.c.l.b16 %v215
      %v261 = vunpack.c.l.b16 %v216
      %v262 = vunpack.c.l.b16 %v217
      %v263 = vpack.c.b16 %v245, %v244
      %v264 = vpack.c.b16 %v247, %v246
      %v265 = vpack.c.b16 %v249, %v248
      %v266 = vpack.c.b16 %v251, %v250
      %v267 = vpack.c.b16 %v253, %v252
      %v268 = vpack.c.b16 %v255, %v254
      %v269 = vpack.c.b16 %v257, %v256
      %v270 = vpack.c.b16 %v259, %v258
      %v271 = vpack.c.b16 %v261, %v260
      %v272 = vpack.c.b16 %v262, %v262
      %vm273 = vsmask.f32 7424
      %v275 = vshrl.u32 %v263, 16
      %v277 = vshll.u32 %v263, 16
      %v279 = vrot.slane %v277, 1
      %v280 = vor.u32 %v275, %v279
      %v282 = vshll.u32 %v264, 16
      %v284 = vrot.slane %v282, 1
      %v285 = vsel %vm273, %v280, %v284
      %v286 = vshrl.u32 %v264, 16
      %v288 = vor.u32 %v286, %v284
      %v290 = vshll.u32 %v265, 16
      %v292 = vrot.slane %v290, 1
      %v293 = vsel %vm273, %v288, %v292
      %v294 = vshrl.u32 %v265, 16
      %v296 = vor.u32 %v294, %v292
      %v298 = vshll.u32 %v266, 16
      %v300 = vrot.slane %v298, 1
      %v301 = vsel %vm273, %v296, %v300
      %v302 = vshrl.u32 %v266, 16
      %v304 = vor.u32 %v302, %v300
      %v306 = vshll.u32 %v267, 16
      %v308 = vrot.slane %v306, 1
      %v309 = vsel %vm273, %v304, %v308
      %v310 = vshrl.u32 %v267, 16
      %v312 = vor.u32 %v310, %v308
      %v314 = vshll.u32 %v268, 16
      %v316 = vrot.slane %v314, 1
      %v317 = vsel %vm273, %v312, %v316
      %v318 = vshrl.u32 %v268, 16
      %v320 = vor.u32 %v318, %v316
      %v322 = vshll.u32 %v269, 16
      %v324 = vrot.slane %v322, 1
      %v325 = vsel %vm273, %v320, %v324
      %v326 = vshrl.u32 %v269, 16
      %v328 = vor.u32 %v326, %v324
      %v330 = vshll.u32 %v270, 16
      %v332 = vrot.slane %v330, 1
      %v333 = vsel %vm273, %v328, %v332
      %v334 = vshrl.u32 %v270, 16
      %v336 = vor.u32 %v334, %v332
      %v338 = vshll.u32 %v271, 16
      %v340 = vrot.slane %v338, 1
      %v341 = vsel %vm273, %v336, %v340
      %v342 = vshrl.u32 %v271, 16
      %v344 = vor.u32 %v342, %v340
      %v346 = vshll.u32 %v272, 16
      %v348 = vrot.slane %v346, 1
      %v349 = vsel %vm273, %v344, %v348
      %vm350 = vcmask 31744
      %v352 = vsel %vm350, %v285, 0
      %v355 = vsel %vm350, %v293, 0
      %v358 = vsel %vm350, %v301, 0
      %v361 = vsel %vm350, %v309, 0
      %v364 = vsel %vm350, %v317, 0
      %v367 = vsel %vm350, %v325, 0
      %v370 = vsel %vm350, %v333, 0
      %v373 = vsel %vm350, %v341, 0
      %v376 = vsel %vm350, %v349, 0
      %vm378 = vcmask 1041408
      %v380 = vsel %vm378, %v224, 0
      %382 = vmatprep.subr.bf16.mxu0 0
      %383 = vmatpush1.bf16.msra.mxu0 %v380
      %384 = vmatprep.subr.bf16.mxu0 0
      %385 = vmatpush1.bf16.msra.mxu0 0
      %386 = vmatprep.subr.bf16.mxu0 0
      %387 = vmatpush1.bf16.msra.mxu0 0
      %388 = vmatprep.subr.bf16.mxu0 0
      %389 = vmatpush1.bf16.msra.mxu0 0
      %390 = vmatprep.subr.bf16.mxu0 0
      %391 = vmatpush1.bf16.msra.mxu0 0
      %392 = vmatprep.subr.bf16.mxu0 0
      %393 = vmatpush1.bf16.msra.mxu0 0
      %394 = vmatprep.subr.bf16.mxu0 0
      %395 = vmatpush1.bf16.msra.mxu0 0
      %396 = vmatprep.subr.bf16.mxu0 0
      %397 = vmatpush1.bf16.msra.mxu0 0
      %398 = vmatprep.subr.bf16.mxu0 0
      %399 = vmatpush1.bf16.msra.mxu0 0
      %400 = vmatprep.subr.bf16.mxu0 0
      %401 = vmatpush1.bf16.msra.mxu0 0
      %402 = vmatprep.subr.bf16.mxu0 0
      %403 = vmatpush1.bf16.msra.mxu0 0
      %404 = vmatprep.subr.bf16.mxu0 0
      %405 = vmatpush1.bf16.msra.mxu0 0
      %406 = vmatprep.subr.bf16.mxu0 0
      %407 = vmatpush1.bf16.msra.mxu0 0
      %408 = vmatprep.subr.bf16.mxu0 0
      %409 = vmatpush1.bf16.msra.mxu0 0
      %410 = vmatprep.subr.bf16.mxu0 0
      %411 = vmatpush1.bf16.msra.mxu0 0
      %412 = vmatprep.subr.bf16.mxu0 0
      %413 = vmatpush1.bf16.msra.mxu0 0
      %414 = vmatprep.mubr.bf16.mxu0 0
      %415 = vmatmul.mubr.bf16.gmra.mrb[0].mxu0 %v352
      %v416 = vpop.f32.mrb[0].mxu0
      %v417 = vadd.f32 0.0, %v416
      %v418 = vpop.f32.mrb[0].mxu0
      %v419 = vpop.f32.mrb[0].mxu0
      %v420 = vadd.f32 0.0, %v419
      %v421 = vpop.f32.mrb[0].mxu0
      %422 = vmatprep.mubr.bf16.mxu0 0
      %423 = vmatmul.mubr.bf16.gmra.mrb[0].mxu0 %v355
      %v424 = vpop.f32.mrb[0].mxu0
      %v425 = vadd.f32 0.0, %v424
      %v426 = vpop.f32.mrb[0].mxu0
      %v427 = vpop.f32.mrb[0].mxu0
      %v428 = vadd.f32 0.0, %v427
      %v429 = vpop.f32.mrb[0].mxu0
      %430 = vmatprep.mubr.bf16.mxu0 0
      %431 = vmatmul.mubr.bf16.gmra.mrb[0].mxu0 %v358
      %v432 = vpop.f32.mrb[0].mxu0
      %v433 = vadd.f32 0.0, %v432
      %v434 = vpop.f32.mrb[0].mxu0
      %v435 = vpop.f32.mrb[0].mxu0
      %v436 = vadd.f32 0.0, %v435
      %v437 = vpop.f32.mrb[0].mxu0
      %438 = vmatprep.mubr.bf16.mxu0 0
      %439 = vmatmul.mubr.bf16.gmra.mrb[0].mxu0 %v361
      %v440 = vpop.f32.mrb[0].mxu0
      %v441 = vadd.f32 0.0, %v440
      %v442 = vpop.f32.mrb[0].mxu0
      %v443 = vpop.f32.mrb[0].mxu0
      %v444 = vadd.f32 0.0, %v443
      %v445 = vpop.f32.mrb[0].mxu0
      %446 = vmatprep.mubr.bf16.mxu0 0
      %447 = vmatmul.mubr.bf16.gmra.mrb[0].mxu0 %v364
      %v448 = vpop.f32.mrb[0].mxu0
      %v449 = vadd.f32 0.0, %v448
      %v450 = vpop.f32.mrb[0].mxu0
      %v451 = vpop.f32.mrb[0].mxu0
      %v452 = vadd.f32 0.0, %v451
      %v453 = vpop.f32.mrb[0].mxu0
      %454 = vmatprep.mubr.bf16.mxu0 0
      %455 = vmatmul.mubr.bf16.gmra.mrb[0].mxu0 %v367
      %v456 = vpop.f32.mrb[0].mxu0
      %v457 = vadd.f32 0.0, %v456
      %v458 = vpop.f32.mrb[0].mxu0
      %v459 = vpop.f32.mrb[0].mxu0
      %v460 = vadd.f32 0.0, %v459
      %v461 = vpop.f32.mrb[0].mxu0
      %462 = vmatprep.mubr.bf16.mxu0 0
      %463 = vmatmul.mubr.bf16.gmra.mrb[0].mxu0 %v370
      %v464 = vpop.f32.mrb[0].mxu0
      %v465 = vadd.f32 0.0, %v464
      %v466 = vpop.f32.mrb[0].mxu0
      %v467 = vpop.f32.mrb[0].mxu0
      %v468 = vadd.f32 0.0, %v467
      %v469 = vpop.f32.mrb[0].mxu0
      %470 = vmatprep.mubr.bf16.mxu0 0
      %471 = vmatmul.mubr.bf16.gmra.mrb[0].mxu0 %v373
      %v472 = vpop.f32.mrb[0].mxu0
      %v473 = vadd.f32 0.0, %v472
      %v474 = vpop.f32.mrb[0].mxu0
      %v475 = vpop.f32.mrb[0].mxu0
      %v476 = vadd.f32 0.0, %v475
      %v477 = vpop.f32.mrb[0].mxu0
      %478 = vmatprep.mubr.bf16.mxu0 0
      %479 = vmatmul.mubr.bf16.gmra.mrb[0].mxu0 %v376
      %v480 = vpop.f32.mrb[0].mxu0
      %v481 = vadd.f32 0.0, %v480
      %v482 = vpop.f32.mrb[0].mxu0
      %v483 = vpop.f32.mrb[0].mxu0
      %v484 = vadd.f32 0.0, %v483
      %v485 = vpop.f32.mrb[0].mxu0
      %486 = vdwg.mxu0
      %v487 = vsel %vm350, %v263, 0
      %v489 = vsel %vm350, %v264, 0
      %v491 = vsel %vm350, %v265, 0
      %v493 = vsel %vm350, %v266, 0
      %v495 = vsel %vm350, %v267, 0
      %v497 = vsel %vm350, %v268, 0
      %v499 = vsel %vm350, %v269, 0
      %v501 = vsel %vm350, %v270, 0
      %v503 = vsel %vm350, %v271, 0
      %v506 = vsel %vm378, %v222, 0
      %508 = vmatprep.subr.bf16.mxu0 0
      %509 = vmatpush1.bf16.msra.mxu0 %v506
      %510 = vmatprep.subr.bf16.mxu0 0
      %511 = vmatpush1.bf16.msra.mxu0 0
      %512 = vmatprep.subr.bf16.mxu0 0
      %513 = vmatpush1.bf16.msra.mxu0 0
      %514 = vmatprep.subr.bf16.mxu0 0
      %515 = vmatpush1.bf16.msra.mxu0 0
      %516 = vmatprep.subr.bf16.mxu0 0
      %517 = vmatpush1.bf16.msra.mxu0 0
      %518 = vmatprep.subr.bf16.mxu0 0
      %519 = vmatpush1.bf16.msra.mxu0 0
      %520 = vmatprep.subr.bf16.mxu0 0
      %521 = vmatpush1.bf16.msra.mxu0 0
      %522 = vmatprep.subr.bf16.mxu0 0
      %523 = vmatpush1.bf16.msra.mxu0 0
      %524 = vmatprep.subr.bf16.mxu0 0
      %525 = vmatpush1.bf16.msra.mxu0 0
      %526 = vmatprep.subr.bf16.mxu0 0
      %527 = vmatpush1.bf16.msra.mxu0 0
      %528 = vmatprep.subr.bf16.mxu0 0
      %529 = vmatpush1.bf16.msra.mxu0 0
      %530 = vmatprep.subr.bf16.mxu0 0
      %531 = vmatpush1.bf16.msra.mxu0 0
      %532 = vmatprep.subr.bf16.mxu0 0
      %533 = vmatpush1.bf16.msra.mxu0 0
      %534 = vmatprep.subr.bf16.mxu0 0
      %535 = vmatpush1.bf16.msra.mxu0 0
      %536 = vmatprep.subr.bf16.mxu0 0
      %537 = vmatpush1.bf16.msra.mxu0 0
      %538 = vmatprep.subr.bf16.mxu0 0
      %539 = vmatpush1.bf16.msra.mxu0 0
      %540 = vmatprep.mubr.bf16.mxu0 0
      %541 = vmatmul.mubr.bf16.gmra.mrb[0].mxu0 %v487
      %v542 = vpop.f32.mrb[0].mxu0
      %v543 = vadd.f32 %v417, %v542
      %v544 = vpop.f32.mrb[0].mxu0
      %v545 = vpop.f32.mrb[0].mxu0
      %v546 = vadd.f32 %v420, %v545
      %v547 = vpop.f32.mrb[0].mxu0
      %548 = vmatprep.mubr.bf16.mxu0 0
      %549 = vmatmul.mubr.bf16.gmra.mrb[0].mxu0 %v489
      %v550 = vpop.f32.mrb[0].mxu0
      %v551 = vadd.f32 %v425, %v550
      %v552 = vpop.f32.mrb[0].mxu0
      %v553 = vpop.f32.mrb[0].mxu0
      %v554 = vadd.f32 %v428, %v553
      %v555 = vpop.f32.mrb[0].mxu0
      %556 = vmatprep.mubr.bf16.mxu0 0
      %557 = vmatmul.mubr.bf16.gmra.mrb[0].mxu0 %v491
      %v558 = vpop.f32.mrb[0].mxu0
      %v559 = vadd.f32 %v433, %v558
      %v560 = vpop.f32.mrb[0].mxu0
      %v561 = vpop.f32.mrb[0].mxu0
      %v562 = vadd.f32 %v436, %v561
      %v563 = vpop.f32.mrb[0].mxu0
      %564 = vmatprep.mubr.bf16.mxu0 0
      %565 = vmatmul.mubr.bf16.gmra.mrb[0].mxu0 %v493
      %v566 = vpop.f32.mrb[0].mxu0
      %v567 = vadd.f32 %v441, %v566
      %v568 = vpop.f32.mrb[0].mxu0
      %v569 = vpop.f32.mrb[0].mxu0
      %v570 = vadd.f32 %v444, %v569
      %v571 = vpop.f32.mrb[0].mxu0
      %572 = vmatprep.mubr.bf16.mxu0 0
      %573 = vmatmul.mubr.bf16.gmra.mrb[0].mxu0 %v495
      %v574 = vpop.f32.mrb[0].mxu0
      %v575 = vadd.f32 %v449, %v574
      %v576 = vpop.f32.mrb[0].mxu0
      %v577 = vpop.f32.mrb[0].mxu0
      %v578 = vadd.f32 %v452, %v577
      %v579 = vpop.f32.mrb[0].mxu0
      %580 = vmatprep.mubr.bf16.mxu0 0
      %581 = vmatmul.mubr.bf16.gmra.mrb[0].mxu0 %v497
      %v582 = vpop.f32.mrb[0].mxu0
      %v583 = vadd.f32 %v457, %v582
      %v584 = vpop.f32.mrb[0].mxu0
      %v585 = vpop.f32.mrb[0].mxu0
      %v586 = vadd.f32 %v460, %v585
      %v587 = vpop.f32.mrb[0].mxu0
      %588 = vmatprep.mubr.bf16.mxu0 0
      %589 = vmatmul.mubr.bf16.gmra.mrb[0].mxu0 %v499
      %v590 = vpop.f32.mrb[0].mxu0
      %v591 = vadd.f32 %v465, %v590
      %v592 = vpop.f32.mrb[0].mxu0
      %v593 = vpop.f32.mrb[0].mxu0
      %v594 = vadd.f32 %v468, %v593
      %v595 = vpop.f32.mrb[0].mxu0
      %596 = vmatprep.mubr.bf16.mxu0 0
      %597 = vmatmul.mubr.bf16.gmra.mrb[0].mxu0 %v501
      %v598 = vpop.f32.mrb[0].mxu0
      %v599 = vadd.f32 %v473, %v598
      %v600 = vpop.f32.mrb[0].mxu0
      %v601 = vpop.f32.mrb[0].mxu0
      %v602 = vadd.f32 %v476, %v601
      %v603 = vpop.f32.mrb[0].mxu0
      %604 = vmatprep.mubr.bf16.mxu0 0
      %605 = vmatmul.mubr.bf16.gmra.mrb[0].mxu0 %v503
      %v606 = vpop.f32.mrb[0].mxu0
      %v607 = vadd.f32 %v481, %v606
      %v608 = vpop.f32.mrb[0].mxu0
      %v609 = vpop.f32.mrb[0].mxu0
      %v610 = vadd.f32 %v484, %v609
      %v611 = vpop.f32.mrb[0].mxu0
      %612 = vdwg.mxu0
      %s613 = scalar_lea.vmem %s1, 4
      %v614 = vld [vmem:[%s613] sm:$0x3]
      %vm615 = vcmask 1046528
      %v616 = vrot.slane %v263, 1
      %v617 = vrot.slane %v264, 1
      %v618 = vsel %vm615, %v616, %v617
      %v619 = vrot.slane %v265, 1
      %v620 = vsel %vm615, %v617, %v619
      %v621 = vrot.slane %v266, 1
      %v622 = vsel %vm615, %v619, %v621
      %v623 = vrot.slane %v267, 1
      %v624 = vsel %vm615, %v621, %v623
      %v625 = vrot.slane %v268, 1
      %v626 = vsel %vm615, %v623, %v625
      %v627 = vrot.slane %v269, 1
      %v628 = vsel %vm615, %v625, %v627
      %v629 = vrot.slane %v270, 1
      %v630 = vsel %vm615, %v627, %v629
      %v631 = vrot.slane %v271, 1
      %v632 = vsel %vm615, %v629, %v631
      %v633 = vrot.slane %v272, 1
      %v634 = vsel %vm615, %v631, %v633
      %v636 = vsel %vm350, %v618, 0
      %v639 = vsel %vm350, %v620, 0
      %v642 = vsel %vm350, %v622, 0
      %v645 = vsel %vm350, %v624, 0
      %v648 = vsel %vm350, %v626, 0
      %v651 = vsel %vm350, %v628, 0
      %v654 = vsel %vm350, %v630, 0
      %v657 = vsel %vm350, %v632, 0
      %v660 = vsel %vm350, %v634, 0
      %v663 = vsel %vm378, %v614, 0
      %665 = vmatprep.subr.bf16.mxu0 0
      %666 = vmatpush1.bf16.msra.mxu0 %v663
      %667 = vmatprep.subr.bf16.mxu0 0
      %668 = vmatpush1.bf16.msra.mxu0 0
      %669 = vmatprep.subr.bf16.mxu0 0
      %670 = vmatpush1.bf16.msra.mxu0 0
      %671 = vmatprep.subr.bf16.mxu0 0
      %672 = vmatpush1.bf16.msra.mxu0 0
      %673 = vmatprep.subr.bf16.mxu0 0
      %674 = vmatpush1.bf16.msra.mxu0 0
      %675 = vmatprep.subr.bf16.mxu0 0
      %676 = vmatpush1.bf16.msra.mxu0 0
      %677 = vmatprep.subr.bf16.mxu0 0
      %678 = vmatpush1.bf16.msra.mxu0 0
      %679 = vmatprep.subr.bf16.mxu0 0
      %680 = vmatpush1.bf16.msra.mxu0 0
      %681 = vmatprep.subr.bf16.mxu0 0
      %682 = vmatpush1.bf16.msra.mxu0 0
      %683 = vmatprep.subr.bf16.mxu0 0
      %684 = vmatpush1.bf16.msra.mxu0 0
      %685 = vmatprep.subr.bf16.mxu0 0
      %686 = vmatpush1.bf16.msra.mxu0 0
      %687 = vmatprep.subr.bf16.mxu0 0
      %688 = vmatpush1.bf16.msra.mxu0 0
      %689 = vmatprep.subr.bf16.mxu0 0
      %690 = vmatpush1.bf16.msra.mxu0 0
      %691 = vmatprep.subr.bf16.mxu0 0
      %692 = vmatpush1.bf16.msra.mxu0 0
      %693 = vmatprep.subr.bf16.mxu0 0
      %694 = vmatpush1.bf16.msra.mxu0 0
      %695 = vmatprep.subr.bf16.mxu0 0
      %696 = vmatpush1.bf16.msra.mxu0 0
      %697 = vmatprep.mubr.bf16.mxu0 0
      %698 = vmatmul.mubr.bf16.gmra.mrb[0].mxu0 %v636
      %v699 = vpop.f32.mrb[0].mxu0
      %v700 = vadd.f32 0.0, %v699
      %v701 = vpop.f32.mrb[0].mxu0
      %v702 = vpop.f32.mrb[0].mxu0
      %v703 = vadd.f32 0.0, %v702
      %v704 = vpop.f32.mrb[0].mxu0
      %705 = vmatprep.mubr.bf16.mxu0 0
      %706 = vmatmul.mubr.bf16.gmra.mrb[0].mxu0 %v639
      %v707 = vpop.f32.mrb[0].mxu0
      %v708 = vadd.f32 0.0, %v707
      %v709 = vpop.f32.mrb[0].mxu0
      %v710 = vpop.f32.mrb[0].mxu0
      %v711 = vadd.f32 0.0, %v710
      %v712 = vpop.f32.mrb[0].mxu0
      %713 = vmatprep.mubr.bf16.mxu0 0
      %714 = vmatmul.mubr.bf16.gmra.mrb[0].mxu0 %v642
      %v715 = vpop.f32.mrb[0].mxu0
      %v716 = vadd.f32 0.0, %v715
      %v717 = vpop.f32.mrb[0].mxu0
      %v718 = vpop.f32.mrb[0].mxu0
      %v719 = vadd.f32 0.0, %v718
      %v720 = vpop.f32.mrb[0].mxu0
      %721 = vmatprep.mubr.bf16.mxu0 0
      %722 = vmatmul.mubr.bf16.gmra.mrb[0].mxu0 %v645
      %v723 = vpop.f32.mrb[0].mxu0
      %v724 = vadd.f32 0.0, %v723
      %v725 = vpop.f32.mrb[0].mxu0
      %v726 = vpop.f32.mrb[0].mxu0
      %v727 = vadd.f32 0.0, %v726
      %v728 = vpop.f32.mrb[0].mxu0
      %729 = vmatprep.mubr.bf16.mxu0 0
      %730 = vmatmul.mubr.bf16.gmra.mrb[0].mxu0 %v648
      %v731 = vpop.f32.mrb[0].mxu0
      %v732 = vadd.f32 0.0, %v731
      %v733 = vpop.f32.mrb[0].mxu0
      %v734 = vpop.f32.mrb[0].mxu0
      %v735 = vadd.f32 0.0, %v734
      %v736 = vpop.f32.mrb[0].mxu0
      %737 = vmatprep.mubr.bf16.mxu0 0
      %738 = vmatmul.mubr.bf16.gmra.mrb[0].mxu0 %v651
      %v739 = vpop.f32.mrb[0].mxu0
      %v740 = vadd.f32 0.0, %v739
      %v741 = vpop.f32.mrb[0].mxu0
      %v742 = vpop.f32.mrb[0].mxu0
      %v743 = vadd.f32 0.0, %v742
      %v744 = vpop.f32.mrb[0].mxu0
      %745 = vmatprep.mubr.bf16.mxu0 0
      %746 = vmatmul.mubr.bf16.gmra.mrb[0].mxu0 %v654
      %v747 = vpop.f32.mrb[0].mxu0
      %v748 = vadd.f32 0.0, %v747
      %v749 = vpop.f32.mrb[0].mxu0
      %v750 = vpop.f32.mrb[0].mxu0
      %v751 = vadd.f32 0.0, %v750
      %v752 = vpop.f32.mrb[0].mxu0
      %753 = vmatprep.mubr.bf16.mxu0 0
      %754 = vmatmul.mubr.bf16.gmra.mrb[0].mxu0 %v657
      %v755 = vpop.f32.mrb[0].mxu0
      %v756 = vadd.f32 0.0, %v755
      %v757 = vpop.f32.mrb[0].mxu0
      %v758 = vpop.f32.mrb[0].mxu0
      %v759 = vadd.f32 0.0, %v758
      %v760 = vpop.f32.mrb[0].mxu0
      %761 = vmatprep.mubr.bf16.mxu0 0
      %762 = vmatmul.mubr.bf16.gmra.mrb[0].mxu0 %v660
      %v763 = vpop.f32.mrb[0].mxu0
      %v764 = vadd.f32 0.0, %v763
      %v765 = vpop.f32.mrb[0].mxu0
      %v766 = vpop.f32.mrb[0].mxu0
      %v767 = vadd.f32 0.0, %v766
      %v768 = vpop.f32.mrb[0].mxu0
      %769 = vdwg.mxu0
      %v770 = vadd.f32 %v543, %v700
      %v771 = vadd.f32 %v546, %v703
      %v772 = vadd.f32 %v551, %v708
      %v773 = vadd.f32 %v554, %v711
      %v774 = vadd.f32 %v559, %v716
      %v775 = vadd.f32 %v562, %v719
      %v776 = vadd.f32 %v567, %v724
      %v777 = vadd.f32 %v570, %v727
      %v778 = vadd.f32 %v575, %v732
      %v779 = vadd.f32 %v578, %v735
      %v780 = vadd.f32 %v583, %v740
      %v781 = vadd.f32 %v586, %v743
      %v782 = vadd.f32 %v591, %v748
      %v783 = vadd.f32 %v594, %v751
      %v784 = vadd.f32 %v599, %v756
      %v785 = vadd.f32 %v602, %v759
      %v786 = vadd.f32 %v607, %v764
      %v787 = vadd.f32 %v610, %v767
      %s788 = scalar_lea.vmem %s1, 6
      %v789 = vld [vmem:[%s788] sm:$0x3]
      %v792 = vunpack.c.l.b16 %v218
      %v793 = vunpack.c.l.b16 %v219
      %v794 = vpack.c.b16 %v792, %v262
      %v795 = vpack.c.b16 %v793, %v793
      %v796 = vrot.slane %v794, 1
      %v797 = vsel %vm615, %v631, %v796
      %v798 = vrot.slane %v795, 1
      %v799 = vsel %vm615, %v796, %v798
      %v801 = vsel %vm350, %v797, 0
      %v804 = vsel %vm350, %v799, 0
      %v807 = vsel %vm378, %v789, 0
      %809 = vmatprep.subr.bf16.mxu0 0
      %810 = vmatpush1.bf16.msra.mxu0 %v807
      %811 = vmatprep.subr.bf16.mxu0 0
      %812 = vmatpush1.bf16.msra.mxu0 0
      %813 = vmatprep.subr.bf16.mxu0 0
      %814 = vmatpush1.bf16.msra.mxu0 0
      %815 = vmatprep.subr.bf16.mxu0 0
      %816 = vmatpush1.bf16.msra.mxu0 0
      %817 = vmatprep.subr.bf16.mxu0 0
      %818 = vmatpush1.bf16.msra.mxu0 0
      %819 = vmatprep.subr.bf16.mxu0 0
      %820 = vmatpush1.bf16.msra.mxu0 0
      %821 = vmatprep.subr.bf16.mxu0 0
      %822 = vmatpush1.bf16.msra.mxu0 0
      %823 = vmatprep.subr.bf16.mxu0 0
      %824 = vmatpush1.bf16.msra.mxu0 0
      %825 = vmatprep.subr.bf16.mxu0 0
      %826 = vmatpush1.bf16.msra.mxu0 0
      %827 = vmatprep.subr.bf16.mxu0 0
      %828 = vmatpush1.bf16.msra.mxu0 0
      %829 = vmatprep.subr.bf16.mxu0 0
      %830 = vmatpush1.bf16.msra.mxu0 0
      %831 = vmatprep.subr.bf16.mxu0 0
      %832 = vmatpush1.bf16.msra.mxu0 0
      %833 = vmatprep.subr.bf16.mxu0 0
      %834 = vmatpush1.bf16.msra.mxu0 0
      %835 = vmatprep.subr.bf16.mxu0 0
      %836 = vmatpush1.bf16.msra.mxu0 0
      %837 = vmatprep.subr.bf16.mxu0 0
      %838 = vmatpush1.bf16.msra.mxu0 0
      %839 = vmatprep.subr.bf16.mxu0 0
      %840 = vmatpush1.bf16.msra.mxu0 0
      %841 = vmatprep.mubr.bf16.mxu0 0
      %842 = vmatmul.mubr.bf16.gmra.mrb[0].mxu0 %v639
      %v843 = vpop.f32.mrb[0].mxu0
      %v844 = vadd.f32 0.0, %v843
      %v845 = vpop.f32.mrb[0].mxu0
      %v846 = vpop.f32.mrb[0].mxu0
      %v847 = vadd.f32 0.0, %v846
      %v848 = vpop.f32.mrb[0].mxu0
      %849 = vmatprep.mubr.bf16.mxu0 0
      %850 = vmatmul.mubr.bf16.gmra.mrb[0].mxu0 %v642
      %v851 = vpop.f32.mrb[0].mxu0
      %v852 = vadd.f32 0.0, %v851
      %v853 = vpop.f32.mrb[0].mxu0
      %v854 = vpop.f32.mrb[0].mxu0
      %v855 = vadd.f32 0.0, %v854
      %v856 = vpop.f32.mrb[0].mxu0
      %857 = vmatprep.mubr.bf16.mxu0 0
      %858 = vmatmul.mubr.bf16.gmra.mrb[0].mxu0 %v645
      %v859 = vpop.f32.mrb[0].mxu0
      %v860 = vadd.f32 0.0, %v859
      %v861 = vpop.f32.mrb[0].mxu0
      %v862 = vpop.f32.mrb[0].mxu0
      %v863 = vadd.f32 0.0, %v862
      %v864 = vpop.f32.mrb[0].mxu0
      %865 = vmatprep.mubr.bf16.mxu0 0
      %866 = vmatmul.mubr.bf16.gmra.mrb[0].mxu0 %v648
      %v867 = vpop.f32.mrb[0].mxu0
      %v868 = vadd.f32 0.0, %v867
      %v869 = vpop.f32.mrb[0].mxu0
      %v870 = vpop.f32.mrb[0].mxu0
      %v871 = vadd.f32 0.0, %v870
      %v872 = vpop.f32.mrb[0].mxu0
      %873 = vmatprep.mubr.bf16.mxu0 0
      %874 = vmatmul.mubr.bf16.gmra.mrb[0].mxu0 %v651
      %v875 = vpop.f32.mrb[0].mxu0
      %v876 = vadd.f32 0.0, %v875
      %v877 = vpop.f32.mrb[0].mxu0
      %v878 = vpop.f32.mrb[0].mxu0
      %v879 = vadd.f32 0.0, %v878
      %v880 = vpop.f32.mrb[0].mxu0
      %881 = vmatprep.mubr.bf16.mxu0 0
      %882 = vmatmul.mubr.bf16.gmra.mrb[0].mxu0 %v654
      %v883 = vpop.f32.mrb[0].mxu0
      %v884 = vadd.f32 0.0, %v883
      %v885 = vpop.f32.mrb[0].mxu0
      %v886 = vpop.f32.mrb[0].mxu0
      %v887 = vadd.f32 0.0, %v886
      %v888 = vpop.f32.mrb[0].mxu0
      %889 = vmatprep.mubr.bf16.mxu0 0
      %890 = vmatmul.mubr.bf16.gmra.mrb[0].mxu0 %v657
      %v891 = vpop.f32.mrb[0].mxu0
      %v892 = vadd.f32 0.0, %v891
      %v893 = vpop.f32.mrb[0].mxu0
      %v894 = vpop.f32.mrb[0].mxu0
      %v895 = vadd.f32 0.0, %v894
      %v896 = vpop.f32.mrb[0].mxu0
      %897 = vmatprep.mubr.bf16.mxu0 0
      %898 = vmatmul.mubr.bf16.gmra.mrb[0].mxu0 %v801
      %v899 = vpop.f32.mrb[0].mxu0
      %v900 = vadd.f32 0.0, %v899
      %v901 = vpop.f32.mrb[0].mxu0
      %v902 = vpop.f32.mrb[0].mxu0
      %v903 = vadd.f32 0.0, %v902
      %v904 = vpop.f32.mrb[0].mxu0
      %905 = vmatprep.mubr.bf16.mxu0 0
      %906 = vmatmul.mubr.bf16.gmra.mrb[0].mxu0 %v804
      %v907 = vpop.f32.mrb[0].mxu0
      %v908 = vadd.f32 0.0, %v907
      %v909 = vpop.f32.mrb[0].mxu0
      %v910 = vpop.f32.mrb[0].mxu0
      %v911 = vadd.f32 0.0, %v910
      %v912 = vpop.f32.mrb[0].mxu0
      %913 = vdwg.mxu0
      %v914 = vadd.f32 %v770, %v844
      %v915 = vadd.f32 %v771, %v847
      %v916 = vadd.f32 %v772, %v852
      %v917 = vadd.f32 %v773, %v855
      %v918 = vadd.f32 %v774, %v860
      %v919 = vadd.f32 %v775, %v863
      %v920 = vadd.f32 %v776, %v868
      %v921 = vadd.f32 %v777, %v871
      %v922 = vadd.f32 %v778, %v876
      %v923 = vadd.f32 %v779, %v879
      %v924 = vadd.f32 %v780, %v884
      %v925 = vadd.f32 %v781, %v887
      %v926 = vadd.f32 %v782, %v892
      %v927 = vadd.f32 %v783, %v895
      %v928 = vadd.f32 %v784, %v900
      %v929 = vadd.f32 %v785, %v903
      %v930 = vadd.f32 %v786, %v908
      %v931 = vadd.f32 %v787, %v911
      %s932 = scalar_lea.vmem %s1, 8
      %v933 = vld [vmem:[%s932] sm:$0x3]
      %vm934 = vsmask.f32 6400
      %v935 = vrot.slane %v286, 1
      %v936 = vrot.slane %v282, 2
      %v937 = vor.u32 %v935, %v936
      %v938 = vrot.slane %v294, 1
      %v939 = vrot.slane %v290, 2
      %v940 = vor.u32 %v938, %v939
      %v941 = vsel %vm934, %v937, %v940
      %v942 = vrot.slane %v302, 1
      %v943 = vrot.slane %v298, 2
      %v944 = vor.u32 %v942, %v943
      %v945 = vsel %vm934, %v940, %v944
      %v946 = vrot.slane %v310, 1
      %v947 = vrot.slane %v306, 2
      %v948 = vor.u32 %v946, %v947
      %v949 = vsel %vm934, %v944, %v948
      %v950 = vrot.slane %v318, 1
      %v951 = vrot.slane %v314, 2
      %v952 = vor.u32 %v950, %v951
      %v953 = vsel %vm934, %v948, %v952
      %v954 = vrot.slane %v326, 1
      %v955 = vrot.slane %v322, 2
      %v956 = vor.u32 %v954, %v955
      %v957 = vsel %vm934, %v952, %v956
      %v958 = vrot.slane %v334, 1
      %v959 = vrot.slane %v330, 2
      %v960 = vor.u32 %v958, %v959
      %v961 = vsel %vm934, %v956, %v960
      %v962 = vrot.slane %v342, 1
      %v963 = vrot.slane %v338, 2
      %v964 = vor.u32 %v962, %v963
      %v965 = vsel %vm934, %v960, %v964
      %v967 = vshrl.u32 %v794, 16
      %v969 = vrot.slane %v967, 1
      %v970 = vshll.u32 %v794, 16
      %v972 = vrot.slane %v970, 2
      %v973 = vor.u32 %v969, %v972
      %v974 = vsel %vm934, %v964, %v973
      %v976 = vshrl.u32 %v795, 16
      %v978 = vrot.slane %v976, 1
      %v979 = vshll.u32 %v795, 16
      %v981 = vrot.slane %v979, 2
      %v982 = vor.u32 %v978, %v981
      %v983 = vsel %vm934, %v973, %v982
      %v985 = vsel %vm350, %v941, 0
      %v988 = vsel %vm350, %v945, 0
      %v991 = vsel %vm350, %v949, 0
      %v994 = vsel %vm350, %v953, 0
      %v997 = vsel %vm350, %v957, 0
      %v1000 = vsel %vm350, %v961, 0
      %v1003 = vsel %vm350, %v965, 0
      %v1006 = vsel %vm350, %v974, 0
      %v1009 = vsel %vm350, %v983, 0
      %v1012 = vsel %vm378, %v933, 0
      %1014 = vmatprep.subr.bf16.mxu0 0
      %1015 = vmatpush1.bf16.msra.mxu0 %v1012
      %1016 = vmatprep.subr.bf16.mxu0 0
      %1017 = vmatpush1.bf16.msra.mxu0 0
      %1018 = vmatprep.subr.bf16.mxu0 0
      %1019 = vmatpush1.bf16.msra.mxu0 0
      %1020 = vmatprep.subr.bf16.mxu0 0
      %1021 = vmatpush1.bf16.msra.mxu0 0
      %1022 = vmatprep.subr.bf16.mxu0 0
      %1023 = vmatpush1.bf16.msra.mxu0 0
      %1024 = vmatprep.subr.bf16.mxu0 0
      %1025 = vmatpush1.bf16.msra.mxu0 0
      %1026 = vmatprep.subr.bf16.mxu0 0
      %1027 = vmatpush1.bf16.msra.mxu0 0
      %1028 = vmatprep.subr.bf16.mxu0 0
      %1029 = vmatpush1.bf16.msra.mxu0 0
      %1030 = vmatprep.subr.bf16.mxu0 0
      %1031 = vmatpush1.bf16.msra.mxu0 0
      %1032 = vmatprep.subr.bf16.mxu0 0
      %1033 = vmatpush1.bf16.msra.mxu0 0
      %1034 = vmatprep.subr.bf16.mxu0 0
      %1035 = vmatpush1.bf16.msra.mxu0 0
      %1036 = vmatprep.subr.bf16.mxu0 0
      %1037 = vmatpush1.bf16.msra.mxu0 0
      %1038 = vmatprep.subr.bf16.mxu0 0
      %1039 = vmatpush1.bf16.msra.mxu0 0
      %1040 = vmatprep.subr.bf16.mxu0 0
      %1041 = vmatpush1.bf16.msra.mxu0 0
      %1042 = vmatprep.subr.bf16.mxu0 0
      %1043 = vmatpush1.bf16.msra.mxu0 0
      %1044 = vmatprep.subr.bf16.mxu0 0
      %1045 = vmatpush1.bf16.msra.mxu0 0
      %1046 = vmatprep.mubr.bf16.mxu0 0
      %1047 = vmatmul.mubr.bf16.gmra.mrb[0].mxu0 %v985
      %v1048 = vpop.f32.mrb[0].mxu0
      %v1049 = vadd.f32 0.0, %v1048
      %v1050 = vpop.f32.mrb[0].mxu0
      %v1051 = vpop.f32.mrb[0].mxu0
      %v1052 = vadd.f32 0.0, %v1051
      %v1053 = vpop.f32.mrb[0].mxu0
      %1054 = vmatprep.mubr.bf16.mxu0 0
      %1055 = vmatmul.mubr.bf16.gmra.mrb[0].mxu0 %v988
      %v1056 = vpop.f32.mrb[0].mxu0
      %v1057 = vadd.f32 0.0, %v1056
      %v1058 = vpop.f32.mrb[0].mxu0
      %v1059 = vpop.f32.mrb[0].mxu0
      %v1060 = vadd.f32 0.0, %v1059
      %v1061 = vpop.f32.mrb[0].mxu0
      %1062 = vmatprep.mubr.bf16.mxu0 0
      %1063 = vmatmul.mubr.bf16.gmra.mrb[0].mxu0 %v991
      %v1064 = vpop.f32.mrb[0].mxu0
      %v1065 = vadd.f32 0.0, %v1064
      %v1066 = vpop.f32.mrb[0].mxu0
      %v1067 = vpop.f32.mrb[0].mxu0
      %v1068 = vadd.f32 0.0, %v1067
      %v1069 = vpop.f32.mrb[0].mxu0
      %1070 = vmatprep.mubr.bf16.mxu0 0
      %1071 = vmatmul.mubr.bf16.gmra.mrb[0].mxu0 %v994
      %v1072 = vpop.f32.mrb[0].mxu0
      %v1073 = vadd.f32 0.0, %v1072
      %v1074 = vpop.f32.mrb[0].mxu0
      %v1075 = vpop.f32.mrb[0].mxu0
      %v1076 = vadd.f32 0.0, %v1075
      %v1077 = vpop.f32.mrb[0].mxu0
      %1078 = vmatprep.mubr.bf16.mxu0 0
      %1079 = vmatmul.mubr.bf16.gmra.mrb[0].mxu0 %v997
      %v1080 = vpop.f32.mrb[0].mxu0
      %v1081 = vadd.f32 0.0, %v1080
      %v1082 = vpop.f32.mrb[0].mxu0
      %v1083 = vpop.f32.mrb[0].mxu0
      %v1084 = vadd.f32 0.0, %v1083
      %v1085 = vpop.f32.mrb[0].mxu0
      %1086 = vmatprep.mubr.bf16.mxu0 0
      %1087 = vmatmul.mubr.bf16.gmra.mrb[0].mxu0 %v1000
      %v1088 = vpop.f32.mrb[0].mxu0
      %v1089 = vadd.f32 0.0, %v1088
      %v1090 = vpop.f32.mrb[0].mxu0
      %v1091 = vpop.f32.mrb[0].mxu0
      %v1092 = vadd.f32 0.0, %v1091
      %v1093 = vpop.f32.mrb[0].mxu0
      %1094 = vmatprep.mubr.bf16.mxu0 0
      %1095 = vmatmul.mubr.bf16.gmra.mrb[0].mxu0 %v1003
      %v1096 = vpop.f32.mrb[0].mxu0
      %v1097 = vadd.f32 0.0, %v1096
      %v1098 = vpop.f32.mrb[0].mxu0
      %v1099 = vpop.f32.mrb[0].mxu0
      %v1100 = vadd.f32 0.0, %v1099
      %v1101 = vpop.f32.mrb[0].mxu0
      %1102 = vmatprep.mubr.bf16.mxu0 0
      %1103 = vmatmul.mubr.bf16.gmra.mrb[0].mxu0 %v1006
      %v1104 = vpop.f32.mrb[0].mxu0
      %v1105 = vadd.f32 0.0, %v1104
      %v1106 = vpop.f32.mrb[0].mxu0
      %v1107 = vpop.f32.mrb[0].mxu0
      %v1108 = vadd.f32 0.0, %v1107
      %v1109 = vpop.f32.mrb[0].mxu0
      %1110 = vmatprep.mubr.bf16.mxu0 0
      %1111 = vmatmul.mubr.bf16.gmra.mrb[0].mxu0 %v1009
      %v1112 = vpop.f32.mrb[0].mxu0
      %v1113 = vadd.f32 0.0, %v1112
      %v1114 = vpop.f32.mrb[0].mxu0
      %v1115 = vpop.f32.mrb[0].mxu0
      %v1116 = vadd.f32 0.0, %v1115
      %v1117 = vpop.f32.mrb[0].mxu0
      %1118 = vdwg.mxu0
      %v1119 = vadd.f32 %v914, %v1049
      %v1120 = vadd.f32 %v915, %v1052
      %v1121 = vadd.f32 %v916, %v1057
      %v1122 = vadd.f32 %v917, %v1060
      %v1123 = vadd.f32 %v918, %v1065
      %v1124 = vadd.f32 %v919, %v1068
      %v1125 = vadd.f32 %v920, %v1073
      %v1126 = vadd.f32 %v921, %v1076
      %v1127 = vadd.f32 %v922, %v1081
      %v1128 = vadd.f32 %v923, %v1084
      %v1129 = vadd.f32 %v924, %v1089
      %v1130 = vadd.f32 %v925, %v1092
      %v1131 = vadd.f32 %v926, %v1097
      %v1132 = vadd.f32 %v927, %v1100
      %v1133 = vadd.f32 %v928, %v1105
      %v1134 = vadd.f32 %v929, %v1108
      %v1135 = vadd.f32 %v930, %v1113
      %v1136 = vadd.f32 %v931, %v1116
      %s1137 = scalar_lea.vmem %s1, 10
      %v1138 = vld [vmem:[%s1137] sm:$0x3]
      %vm1139 = vcmask 1045504
      %v1140 = vrot.slane %v264, 2
      %v1141 = vrot.slane %v265, 2
      %v1142 = vsel %vm1139, %v1140, %v1141
      %v1143 = vrot.slane %v266, 2
      %v1144 = vsel %vm1139, %v1141, %v1143
      %v1145 = vrot.slane %v267, 2
      %v1146 = vsel %vm1139, %v1143, %v1145
      %v1147 = vrot.slane %v268, 2
      %v1148 = vsel %vm1139, %v1145, %v1147
      %v1149 = vrot.slane %v269, 2
      %v1150 = vsel %vm1139, %v1147, %v1149
      %v1151 = vrot.slane %v270, 2
      %v1152 = vsel %vm1139, %v1149, %v1151
      %v1153 = vrot.slane %v271, 2
      %v1154 = vsel %vm1139, %v1151, %v1153
      %v1155 = vrot.slane %v794, 2
      %v1156 = vsel %vm1139, %v1153, %v1155
      %v1157 = vrot.slane %v795, 2
      %v1158 = vsel %vm1139, %v1155, %v1157
      %v1160 = vsel %vm350, %v1142, 0
      %v1163 = vsel %vm350, %v1144, 0
      %v1166 = vsel %vm350, %v1146, 0
      %v1169 = vsel %vm350, %v1148, 0
      %v1172 = vsel %vm350, %v1150, 0
      %v1175 = vsel %vm350, %v1152, 0
      %v1178 = vsel %vm350, %v1154, 0
      %v1181 = vsel %vm350, %v1156, 0
      %v1184 = vsel %vm350, %v1158, 0
      %v1187 = vsel %vm378, %v1138, 0
      %1189 = vmatprep.subr.bf16.mxu0 0
      %1190 = vmatpush1.bf16.msra.mxu0 %v1187
      %1191 = vmatprep.subr.bf16.mxu0 0
      %1192 = vmatpush1.bf16.msra.mxu0 0
      %1193 = vmatprep.subr.bf16.mxu0 0
      %1194 = vmatpush1.bf16.msra.mxu0 0
      %1195 = vmatprep.subr.bf16.mxu0 0
      %1196 = vmatpush1.bf16.msra.mxu0 0
      %1197 = vmatprep.subr.bf16.mxu0 0
      %1198 = vmatpush1.bf16.msra.mxu0 0
      %1199 = vmatprep.subr.bf16.mxu0 0
      %1200 = vmatpush1.bf16.msra.mxu0 0
      %1201 = vmatprep.subr.bf16.mxu0 0
      %1202 = vmatpush1.bf16.msra.mxu0 0
      %1203 = vmatprep.subr.bf16.mxu0 0
      %1204 = vmatpush1.bf16.msra.mxu0 0
      %1205 = vmatprep.subr.bf16.mxu0 0
      %1206 = vmatpush1.bf16.msra.mxu0 0
      %1207 = vmatprep.subr.bf16.mxu0 0
      %1208 = vmatpush1.bf16.msra.mxu0 0
      %1209 = vmatprep.subr.bf16.mxu0 0
      %1210 = vmatpush1.bf16.msra.mxu0 0
      %1211 = vmatprep.subr.bf16.mxu0 0
      %1212 = vmatpush1.bf16.msra.mxu0 0
      %1213 = vmatprep.subr.bf16.mxu0 0
      %1214 = vmatpush1.bf16.msra.mxu0 0
      %1215 = vmatprep.subr.bf16.mxu0 0
      %1216 = vmatpush1.bf16.msra.mxu0 0
      %1217 = vmatprep.subr.bf16.mxu0 0
      %1218 = vmatpush1.bf16.msra.mxu0 0
      %1219 = vmatprep.subr.bf16.mxu0 0
      %1220 = vmatpush1.bf16.msra.mxu0 0
      %1221 = vmatprep.mubr.bf16.mxu0 0
      %1222 = vmatmul.mubr.bf16.gmra.mrb[0].mxu0 %v1160
      %v1223 = vpop.f32.mrb[0].mxu0
      %v1224 = vadd.f32 0.0, %v1223
      %v1225 = vpop.f32.mrb[0].mxu0
      %v1226 = vpop.f32.mrb[0].mxu0
      %v1227 = vadd.f32 0.0, %v1226
      %v1228 = vpop.f32.mrb[0].mxu0
      %1229 = vmatprep.mubr.bf16.mxu0 0
      %1230 = vmatmul.mubr.bf16.gmra.mrb[0].mxu0 %v1163
      %v1231 = vpop.f32.mrb[0].mxu0
      %v1232 = vadd.f32 0.0, %v1231
      %v1233 = vpop.f32.mrb[0].mxu0
      %v1234 = vpop.f32.mrb[0].mxu0
      %v1235 = vadd.f32 0.0, %v1234
      %v1236 = vpop.f32.mrb[0].mxu0
      %1237 = vmatprep.mubr.bf16.mxu0 0
      %1238 = vmatmul.mubr.bf16.gmra.mrb[0].mxu0 %v1166
      %v1239 = vpop.f32.mrb[0].mxu0
      %v1240 = vadd.f32 0.0, %v1239
      %v1241 = vpop.f32.mrb[0].mxu0
      %v1242 = vpop.f32.mrb[0].mxu0
      %v1243 = vadd.f32 0.0, %v1242
      %v1244 = vpop.f32.mrb[0].mxu0
      %1245 = vmatprep.mubr.bf16.mxu0 0
      %1246 = vmatmul.mubr.bf16.gmra.mrb[0].mxu0 %v1169
      %v1247 = vpop.f32.mrb[0].mxu0
      %v1248 = vadd.f32 0.0, %v1247
      %v1249 = vpop.f32.mrb[0].mxu0
      %v1250 = vpop.f32.mrb[0].mxu0
      %v1251 = vadd.f32 0.0, %v1250
      %v1252 = vpop.f32.mrb[0].mxu0
      %1253 = vmatprep.mubr.bf16.mxu0 0
      %1254 = vmatmul.mubr.bf16.gmra.mrb[0].mxu0 %v1172
      %v1255 = vpop.f32.mrb[0].mxu0
      %v1256 = vadd.f32 0.0, %v1255
      %v1257 = vpop.f32.mrb[0].mxu0
      %v1258 = vpop.f32.mrb[0].mxu0
      %v1259 = vadd.f32 0.0, %v1258
      %v1260 = vpop.f32.mrb[0].mxu0
      %1261 = vmatprep.mubr.bf16.mxu0 0
      %1262 = vmatmul.mubr.bf16.gmra.mrb[0].mxu0 %v1175
      %v1263 = vpop.f32.mrb[0].mxu0
      %v1264 = vadd.f32 0.0, %v1263
      %v1265 = vpop.f32.mrb[0].mxu0
      %v1266 = vpop.f32.mrb[0].mxu0
      %v1267 = vadd.f32 0.0, %v1266
      %v1268 = vpop.f32.mrb[0].mxu0
      %1269 = vmatprep.mubr.bf16.mxu0 0
      %1270 = vmatmul.mubr.bf16.gmra.mrb[0].mxu0 %v1178
      %v1271 = vpop.f32.mrb[0].mxu0
      %v1272 = vadd.f32 0.0, %v1271
      %v1273 = vpop.f32.mrb[0].mxu0
      %v1274 = vpop.f32.mrb[0].mxu0
      %v1275 = vadd.f32 0.0, %v1274
      %v1276 = vpop.f32.mrb[0].mxu0
      %1277 = vmatprep.mubr.bf16.mxu0 0
      %1278 = vmatmul.mubr.bf16.gmra.mrb[0].mxu0 %v1181
      %v1279 = vpop.f32.mrb[0].mxu0
      %v1280 = vadd.f32 0.0, %v1279
      %v1281 = vpop.f32.mrb[0].mxu0
      %v1282 = vpop.f32.mrb[0].mxu0
      %v1283 = vadd.f32 0.0, %v1282
      %v1284 = vpop.f32.mrb[0].mxu0
      %1285 = vmatprep.mubr.bf16.mxu0 0
      %1286 = vmatmul.mubr.bf16.gmra.mrb[0].mxu0 %v1184
      %v1287 = vpop.f32.mrb[0].mxu0
      %v1288 = vadd.f32 0.0, %v1287
      %v1289 = vpop.f32.mrb[0].mxu0
      %v1290 = vpop.f32.mrb[0].mxu0
      %v1291 = vadd.f32 0.0, %v1290
      %v1292 = vpop.f32.mrb[0].mxu0
      %1293 = vdwg.mxu0
      %v1294 = vadd.f32 %v1119, %v1224
      %v1295 = vadd.f32 %v1120, %v1227
      %v1296 = vadd.f32 %v1121, %v1232
      %v1297 = vadd.f32 %v1122, %v1235
      %v1298 = vadd.f32 %v1123, %v1240
      %v1299 = vadd.f32 %v1124, %v1243
      %v1300 = vadd.f32 %v1125, %v1248
      %v1301 = vadd.f32 %v1126, %v1251
      %v1302 = vadd.f32 %v1127, %v1256
      %v1303 = vadd.f32 %v1128, %v1259
      %v1304 = vadd.f32 %v1129, %v1264
      %v1305 = vadd.f32 %v1130, %v1267
      %v1306 = vadd.f32 %v1131, %v1272
      %v1307 = vadd.f32 %v1132, %v1275
      %v1308 = vadd.f32 %v1133, %v1280
      %v1309 = vadd.f32 %v1134, %v1283
      %v1310 = vadd.f32 %v1135, %v1288
      %v1311 = vadd.f32 %v1136, %v1291
      %s1312 = scalar_lea.vmem %s1, 12
      %v1313 = vld [vmem:[%s1312] sm:$0x3]
      %v1316 = vunpack.c.l.b16 %v220
      %v1317 = vunpack.c.l.b16 %v221
      %v1318 = vpack.c.b16 %v1316, %v793
      %v1319 = vpack.c.b16 %v1317, %v1317
      %v1320 = vrot.slane %v1318, 2
      %v1321 = vsel %vm1139, %v1155, %v1320
      %v1322 = vrot.slane %v1319, 2
      %v1323 = vsel %vm1139, %v1320, %v1322
      %v1325 = vsel %vm350, %v1321, 0
      %v1328 = vsel %vm350, %v1323, 0
      %v1331 = vsel %vm378, %v1313, 0
      %1333 = vmatprep.subr.bf16.mxu0 0
      %1334 = vmatpush1.bf16.msra.mxu0 %v1331
      %1335 = vmatprep.subr.bf16.mxu0 0
      %1336 = vmatpush1.bf16.msra.mxu0 0
      %1337 = vmatprep.subr.bf16.mxu0 0
      %1338 = vmatpush1.bf16.msra.mxu0 0
      %1339 = vmatprep.subr.bf16.mxu0 0
      %1340 = vmatpush1.bf16.msra.mxu0 0
      %1341 = vmatprep.subr.bf16.mxu0 0
      %1342 = vmatpush1.bf16.msra.mxu0 0
      %1343 = vmatprep.subr.bf16.mxu0 0
      %1344 = vmatpush1.bf16.msra.mxu0 0
      %1345 = vmatprep.subr.bf16.mxu0 0
      %1346 = vmatpush1.bf16.msra.mxu0 0
      %1347 = vmatprep.subr.bf16.mxu0 0
      %1348 = vmatpush1.bf16.msra.mxu0 0
      %1349 = vmatprep.subr.bf16.mxu0 0
      %1350 = vmatpush1.bf16.msra.mxu0 0
      %1351 = vmatprep.subr.bf16.mxu0 0
      %1352 = vmatpush1.bf16.msra.mxu0 0
      %1353 = vmatprep.subr.bf16.mxu0 0
      %1354 = vmatpush1.bf16.msra.mxu0 0
      %1355 = vmatprep.subr.bf16.mxu0 0
      %1356 = vmatpush1.bf16.msra.mxu0 0
      %1357 = vmatprep.subr.bf16.mxu0 0
      %1358 = vmatpush1.bf16.msra.mxu0 0
      %1359 = vmatprep.subr.bf16.mxu0 0
      %1360 = vmatpush1.bf16.msra.mxu0 0
      %1361 = vmatprep.subr.bf16.mxu0 0
      %1362 = vmatpush1.bf16.msra.mxu0 0
      %1363 = vmatprep.subr.bf16.mxu0 0
      %1364 = vmatpush1.bf16.msra.mxu0 0
      %1365 = vmatprep.mubr.bf16.mxu0 0
      %1366 = vmatmul.mubr.bf16.gmra.mrb[0].mxu0 %v1163
      %v1367 = vpop.f32.mrb[0].mxu0
      %v1368 = vadd.f32 0.0, %v1367
      %v1369 = vpop.f32.mrb[0].mxu0
      %v1370 = vpop.f32.mrb[0].mxu0
      %v1371 = vadd.f32 0.0, %v1370
      %v1372 = vpop.f32.mrb[0].mxu0
      %1373 = vmatprep.mubr.bf16.mxu0 0
      %1374 = vmatmul.mubr.bf16.gmra.mrb[0].mxu0 %v1166
      %v1375 = vpop.f32.mrb[0].mxu0
      %v1376 = vadd.f32 0.0, %v1375
      %v1377 = vpop.f32.mrb[0].mxu0
      %v1378 = vpop.f32.mrb[0].mxu0
      %v1379 = vadd.f32 0.0, %v1378
      %v1380 = vpop.f32.mrb[0].mxu0
      %1381 = vmatprep.mubr.bf16.mxu0 0
      %1382 = vmatmul.mubr.bf16.gmra.mrb[0].mxu0 %v1169
      %v1383 = vpop.f32.mrb[0].mxu0
      %v1384 = vadd.f32 0.0, %v1383
      %v1385 = vpop.f32.mrb[0].mxu0
      %v1386 = vpop.f32.mrb[0].mxu0
      %v1387 = vadd.f32 0.0, %v1386
      %v1388 = vpop.f32.mrb[0].mxu0
      %1389 = vmatprep.mubr.bf16.mxu0 0
      %1390 = vmatmul.mubr.bf16.gmra.mrb[0].mxu0 %v1172
      %v1391 = vpop.f32.mrb[0].mxu0
      %v1392 = vadd.f32 0.0, %v1391
      %v1393 = vpop.f32.mrb[0].mxu0
      %v1394 = vpop.f32.mrb[0].mxu0
      %v1395 = vadd.f32 0.0, %v1394
      %v1396 = vpop.f32.mrb[0].mxu0
      %1397 = vmatprep.mubr.bf16.mxu0 0
      %1398 = vmatmul.mubr.bf16.gmra.mrb[0].mxu0 %v1175
      %v1399 = vpop.f32.mrb[0].mxu0
      %v1400 = vadd.f32 0.0, %v1399
      %v1401 = vpop.f32.mrb[0].mxu0
      %v1402 = vpop.f32.mrb[0].mxu0
      %v1403 = vadd.f32 0.0, %v1402
      %v1404 = vpop.f32.mrb[0].mxu0
      %1405 = vmatprep.mubr.bf16.mxu0 0
      %1406 = vmatmul.mubr.bf16.gmra.mrb[0].mxu0 %v1178
      %v1407 = vpop.f32.mrb[0].mxu0
      %v1408 = vadd.f32 0.0, %v1407
      %v1409 = vpop.f32.mrb[0].mxu0
      %v1410 = vpop.f32.mrb[0].mxu0
      %v1411 = vadd.f32 0.0, %v1410
      %v1412 = vpop.f32.mrb[0].mxu0
      %1413 = vmatprep.mubr.bf16.mxu0 0
      %1414 = vmatmul.mubr.bf16.gmra.mrb[0].mxu0 %v1181
      %v1415 = vpop.f32.mrb[0].mxu0
      %v1416 = vadd.f32 0.0, %v1415
      %v1417 = vpop.f32.mrb[0].mxu0
      %v1418 = vpop.f32.mrb[0].mxu0
      %v1419 = vadd.f32 0.0, %v1418
      %v1420 = vpop.f32.mrb[0].mxu0
      %1421 = vmatprep.mubr.bf16.mxu0 0
      %1422 = vmatmul.mubr.bf16.gmra.mrb[0].mxu0 %v1325
      %v1423 = vpop.f32.mrb[0].mxu0
      %v1424 = vadd.f32 0.0, %v1423
      %v1425 = vpop.f32.mrb[0].mxu0
      %v1426 = vpop.f32.mrb[0].mxu0
      %v1427 = vadd.f32 0.0, %v1426
      %v1428 = vpop.f32.mrb[0].mxu0
      %1429 = vmatprep.mubr.bf16.mxu0 0
      %1430 = vmatmul.mubr.bf16.gmra.mrb[0].mxu0 %v1328
      %v1431 = vpop.f32.mrb[0].mxu0
      %v1432 = vadd.f32 0.0, %v1431
      %v1433 = vpop.f32.mrb[0].mxu0
      %v1434 = vpop.f32.mrb[0].mxu0
      %v1435 = vadd.f32 0.0, %v1434
      %v1436 = vpop.f32.mrb[0].mxu0
      %1437 = vdwg.mxu0
      %v1438 = vadd.f32 %v1294, %v1368
      %v1439 = vadd.f32 %v1295, %v1371
      %v1440 = vadd.f32 %v1296, %v1376
      %v1441 = vadd.f32 %v1297, %v1379
      %v1442 = vadd.f32 %v1298, %v1384
      %v1443 = vadd.f32 %v1299, %v1387
      %v1444 = vadd.f32 %v1300, %v1392
      %v1445 = vadd.f32 %v1301, %v1395
      %v1446 = vadd.f32 %v1302, %v1400
      %v1447 = vadd.f32 %v1303, %v1403
      %v1448 = vadd.f32 %v1304, %v1408
      %v1449 = vadd.f32 %v1305, %v1411
      %v1450 = vadd.f32 %v1306, %v1416
      %v1451 = vadd.f32 %v1307, %v1419
      %v1452 = vadd.f32 %v1308, %v1424
      %v1453 = vadd.f32 %v1309, %v1427
      %v1454 = vadd.f32 %v1310, %v1432
      %v1455 = vadd.f32 %v1311, %v1435
      %s1456 = scalar_lea.vmem %s1, 14
      %v1457 = vld [vmem:[%s1456] sm:$0x3]
      %vm1458 = vsmask.f32 5376
      %v1459 = vrot.slane %v294, 2
      %v1460 = vrot.slane %v290, 3
      %v1461 = vor.u32 %v1459, %v1460
      %v1462 = vrot.slane %v302, 2
      %v1463 = vrot.slane %v298, 3
      %v1464 = vor.u32 %v1462, %v1463
      %v1465 = vsel %vm1458, %v1461, %v1464
      %v1466 = vrot.slane %v310, 2
      %v1467 = vrot.slane %v306, 3
      %v1468 = vor.u32 %v1466, %v1467
      %v1469 = vsel %vm1458, %v1464, %v1468
      %v1470 = vrot.slane %v318, 2
      %v1471 = vrot.slane %v314, 3
      %v1472 = vor.u32 %v1470, %v1471
      %v1473 = vsel %vm1458, %v1468, %v1472
      %v1474 = vrot.slane %v326, 2
      %v1475 = vrot.slane %v322, 3
      %v1476 = vor.u32 %v1474, %v1475
      %v1477 = vsel %vm1458, %v1472, %v1476
      %v1478 = vrot.slane %v334, 2
      %v1479 = vrot.slane %v330, 3
      %v1480 = vor.u32 %v1478, %v1479
      %v1481 = vsel %vm1458, %v1476, %v1480
      %v1482 = vrot.slane %v342, 2
      %v1483 = vrot.slane %v338, 3
      %v1484 = vor.u32 %v1482, %v1483
      %v1485 = vsel %vm1458, %v1480, %v1484
      %v1486 = vrot.slane %v967, 2
      %v1487 = vrot.slane %v970, 3
      %v1488 = vor.u32 %v1486, %v1487
      %v1489 = vsel %vm1458, %v1484, %v1488
      %v1491 = vshrl.u32 %v1318, 16
      %v1493 = vrot.slane %v1491, 2
      %v1494 = vshll.u32 %v1318, 16
      %v1496 = vrot.slane %v1494, 3
      %v1497 = vor.u32 %v1493, %v1496
      %v1498 = vsel %vm1458, %v1488, %v1497
      %v1500 = vshrl.u32 %v1319, 16
      %v1502 = vrot.slane %v1500, 2
      %v1503 = vshll.u32 %v1319, 16
      %v1505 = vrot.slane %v1503, 3
      %v1506 = vor.u32 %v1502, %v1505
      %v1507 = vsel %vm1458, %v1497, %v1506
      %v1509 = vsel %vm350, %v1465, 0
      %v1512 = vsel %vm350, %v1469, 0
      %v1515 = vsel %vm350, %v1473, 0
      %v1518 = vsel %vm350, %v1477, 0
      %v1521 = vsel %vm350, %v1481, 0
      %v1524 = vsel %vm350, %v1485, 0
      %v1527 = vsel %vm350, %v1489, 0
      %v1530 = vsel %vm350, %v1498, 0
      %v1533 = vsel %vm350, %v1507, 0
      %v1536 = vsel %vm378, %v1457, 0
      %1538 = vmatprep.subr.bf16.mxu0 0
      %1539 = vmatpush1.bf16.msra.mxu0 %v1536
      %1540 = vmatprep.subr.bf16.mxu0 0
      %1541 = vmatpush1.bf16.msra.mxu0 0
      %1542 = vmatprep.subr.bf16.mxu0 0
      %1543 = vmatpush1.bf16.msra.mxu0 0
      %1544 = vmatprep.subr.bf16.mxu0 0
      %1545 = vmatpush1.bf16.msra.mxu0 0
      %1546 = vmatprep.subr.bf16.mxu0 0
      %1547 = vmatpush1.bf16.msra.mxu0 0
      %1548 = vmatprep.subr.bf16.mxu0 0
      %1549 = vmatpush1.bf16.msra.mxu0 0
      %1550 = vmatprep.subr.bf16.mxu0 0
      %1551 = vmatpush1.bf16.msra.mxu0 0
      %1552 = vmatprep.subr.bf16.mxu0 0
      %1553 = vmatpush1.bf16.msra.mxu0 0
      %1554 = vmatprep.subr.bf16.mxu0 0
      %1555 = vmatpush1.bf16.msra.mxu0 0
      %1556 = vmatprep.subr.bf16.mxu0 0
      %1557 = vmatpush1.bf16.msra.mxu0 0
      %1558 = vmatprep.subr.bf16.mxu0 0
      %1559 = vmatpush1.bf16.msra.mxu0 0
      %1560 = vmatprep.subr.bf16.mxu0 0
      %1561 = vmatpush1.bf16.msra.mxu0 0
      %1562 = vmatprep.subr.bf16.mxu0 0
      %1563 = vmatpush1.bf16.msra.mxu0 0
      %1564 = vmatprep.subr.bf16.mxu0 0
      %1565 = vmatpush1.bf16.msra.mxu0 0
      %1566 = vmatprep.subr.bf16.mxu0 0
      %1567 = vmatpush1.bf16.msra.mxu0 0
      %1568 = vmatprep.subr.bf16.mxu0 0
      %1569 = vmatpush1.bf16.msra.mxu0 0
      %1570 = vmatprep.mubr.bf16.mxu0 0
      %1571 = vmatmul.mubr.bf16.gmra.mrb[0].mxu0 %v1509
      %v1572 = vpop.f32.mrb[0].mxu0
      %v1573 = vadd.f32 0.0, %v1572
      %v1574 = vpop.f32.mrb[0].mxu0
      %v1575 = vpop.f32.mrb[0].mxu0
      %v1576 = vadd.f32 0.0, %v1575
      %v1577 = vpop.f32.mrb[0].mxu0
      %1578 = vmatprep.mubr.bf16.mxu0 0
      %1579 = vmatmul.mubr.bf16.gmra.mrb[0].mxu0 %v1512
      %v1580 = vpop.f32.mrb[0].mxu0
      %v1581 = vadd.f32 0.0, %v1580
      %v1582 = vpop.f32.mrb[0].mxu0
      %v1583 = vpop.f32.mrb[0].mxu0
      %v1584 = vadd.f32 0.0, %v1583
      %v1585 = vpop.f32.mrb[0].mxu0
      %1586 = vmatprep.mubr.bf16.mxu0 0
      %1587 = vmatmul.mubr.bf16.gmra.mrb[0].mxu0 %v1515
      %v1588 = vpop.f32.mrb[0].mxu0
      %v1589 = vadd.f32 0.0, %v1588
      %v1590 = vpop.f32.mrb[0].mxu0
      %v1591 = vpop.f32.mrb[0].mxu0
      %v1592 = vadd.f32 0.0, %v1591
      %v1593 = vpop.f32.mrb[0].mxu0
      %1594 = vmatprep.mubr.bf16.mxu0 0
      %1595 = vmatmul.mubr.bf16.gmra.mrb[0].mxu0 %v1518
      %v1596 = vpop.f32.mrb[0].mxu0
      %v1597 = vadd.f32 0.0, %v1596
      %v1598 = vpop.f32.mrb[0].mxu0
      %v1599 = vpop.f32.mrb[0].mxu0
      %v1600 = vadd.f32 0.0, %v1599
      %v1601 = vpop.f32.mrb[0].mxu0
      %1602 = vmatprep.mubr.bf16.mxu0 0
      %1603 = vmatmul.mubr.bf16.gmra.mrb[0].mxu0 %v1521
      %v1604 = vpop.f32.mrb[0].mxu0
      %v1605 = vadd.f32 0.0, %v1604
      %v1606 = vpop.f32.mrb[0].mxu0
      %v1607 = vpop.f32.mrb[0].mxu0
      %v1608 = vadd.f32 0.0, %v1607
      %v1609 = vpop.f32.mrb[0].mxu0
      %1610 = vmatprep.mubr.bf16.mxu0 0
      %1611 = vmatmul.mubr.bf16.gmra.mrb[0].mxu0 %v1524
      %v1612 = vpop.f32.mrb[0].mxu0
      %v1613 = vadd.f32 0.0, %v1612
      %v1614 = vpop.f32.mrb[0].mxu0
      %v1615 = vpop.f32.mrb[0].mxu0
      %v1616 = vadd.f32 0.0, %v1615
      %v1617 = vpop.f32.mrb[0].mxu0
      %1618 = vmatprep.mubr.bf16.mxu0 0
      %1619 = vmatmul.mubr.bf16.gmra.mrb[0].mxu0 %v1527
      %v1620 = vpop.f32.mrb[0].mxu0
      %v1621 = vadd.f32 0.0, %v1620
      %v1622 = vpop.f32.mrb[0].mxu0
      %v1623 = vpop.f32.mrb[0].mxu0
      %v1624 = vadd.f32 0.0, %v1623
      %v1625 = vpop.f32.mrb[0].mxu0
      %1626 = vmatprep.mubr.bf16.mxu0 0
      %1627 = vmatmul.mubr.bf16.gmra.mrb[0].mxu0 %v1530
      %v1628 = vpop.f32.mrb[0].mxu0
      %v1629 = vadd.f32 0.0, %v1628
      %v1630 = vpop.f32.mrb[0].mxu0
      %v1631 = vpop.f32.mrb[0].mxu0
      %v1632 = vadd.f32 0.0, %v1631
      %v1633 = vpop.f32.mrb[0].mxu0
      %1634 = vmatprep.mubr.bf16.mxu0 0
      %1635 = vmatmul.mubr.bf16.gmra.mrb[0].mxu0 %v1533
      %v1636 = vpop.f32.mrb[0].mxu0
      %v1637 = vadd.f32 0.0, %v1636
      %v1638 = vpop.f32.mrb[0].mxu0
      %v1639 = vpop.f32.mrb[0].mxu0
      %v1640 = vadd.f32 0.0, %v1639
      %v1641 = vpop.f32.mrb[0].mxu0
      %1642 = vdwg.mxu0
      %v1643 = vadd.f32 %v1438, %v1573
      %v1644 = vadd.f32 %v1439, %v1576
      %v1645 = vadd.f32 %v1440, %v1581
      %v1646 = vadd.f32 %v1441, %v1584
      %v1647 = vadd.f32 %v1442, %v1589
      %v1648 = vadd.f32 %v1443, %v1592
      %v1649 = vadd.f32 %v1444, %v1597
      %v1650 = vadd.f32 %v1445, %v1600
      %v1651 = vadd.f32 %v1446, %v1605
      %v1652 = vadd.f32 %v1447, %v1608
      %v1653 = vadd.f32 %v1448, %v1613
      %v1654 = vadd.f32 %v1449, %v1616
      %v1655 = vadd.f32 %v1450, %v1621
      %v1656 = vadd.f32 %v1451, %v1624
      %v1657 = vadd.f32 %v1452, %v1629
      %v1658 = vadd.f32 %v1453, %v1632
      %v1659 = vadd.f32 %v1454, %v1637
      %v1660 = vadd.f32 %v1455, %v1640
      %s1661 = scalar_lea.vmem %s1, 16
      %v1662 = vld [vmem:[%s1661] sm:$0x3]
      %vm1663 = vcmask 1044480
      %v1664 = vrot.slane %v265, 3
      %v1665 = vrot.slane %v266, 3
      %v1666 = vsel %vm1663, %v1664, %v1665
      %v1667 = vrot.slane %v267, 3
      %v1668 = vsel %vm1663, %v1665, %v1667
      %v1669 = vrot.slane %v268, 3
      %v1670 = vsel %vm1663, %v1667, %v1669
      %v1671 = vrot.slane %v269, 3
      %v1672 = vsel %vm1663, %v1669, %v1671
      %v1673 = vrot.slane %v270, 3
      %v1674 = vsel %vm1663, %v1671, %v1673
      %v1675 = vrot.slane %v271, 3
      %v1676 = vsel %vm1663, %v1673, %v1675
      %v1677 = vrot.slane %v794, 3
      %v1678 = vsel %vm1663, %v1675, %v1677
      %v1679 = vrot.slane %v1318, 3
      %v1680 = vsel %vm1663, %v1677, %v1679
      %v1681 = vrot.slane %v1319, 3
      %v1682 = vsel %vm1663, %v1679, %v1681
      %v1684 = vsel %vm350, %v1666, 0
      %v1687 = vsel %vm350, %v1668, 0
      %v1690 = vsel %vm350, %v1670, 0
      %v1693 = vsel %vm350, %v1672, 0
      %v1696 = vsel %vm350, %v1674, 0
      %v1699 = vsel %vm350, %v1676, 0
      %v1702 = vsel %vm350, %v1678, 0
      %v1705 = vsel %vm350, %v1680, 0
      %v1708 = vsel %vm350, %v1682, 0
      %v1711 = vsel %vm378, %v1662, 0
      %1713 = vmatprep.subr.bf16.mxu0 0
      %1714 = vmatpush1.bf16.msra.mxu0 %v1711
      %1715 = vmatprep.subr.bf16.mxu0 0
      %1716 = vmatpush1.bf16.msra.mxu0 0
      %1717 = vmatprep.subr.bf16.mxu0 0
      %1718 = vmatpush1.bf16.msra.mxu0 0
      %1719 = vmatprep.subr.bf16.mxu0 0
      %1720 = vmatpush1.bf16.msra.mxu0 0
      %1721 = vmatprep.subr.bf16.mxu0 0
      %1722 = vmatpush1.bf16.msra.mxu0 0
      %1723 = vmatprep.subr.bf16.mxu0 0
      %1724 = vmatpush1.bf16.msra.mxu0 0
      %1725 = vmatprep.subr.bf16.mxu0 0
      %1726 = vmatpush1.bf16.msra.mxu0 0
      %1727 = vmatprep.subr.bf16.mxu0 0
      %1728 = vmatpush1.bf16.msra.mxu0 0
      %1729 = vmatprep.subr.bf16.mxu0 0
      %1730 = vmatpush1.bf16.msra.mxu0 0
      %1731 = vmatprep.subr.bf16.mxu0 0
      %1732 = vmatpush1.bf16.msra.mxu0 0
      %1733 = vmatprep.subr.bf16.mxu0 0
      %1734 = vmatpush1.bf16.msra.mxu0 0
      %1735 = vmatprep.subr.bf16.mxu0 0
      %1736 = vmatpush1.bf16.msra.mxu0 0
      %1737 = vmatprep.subr.bf16.mxu0 0
      %1738 = vmatpush1.bf16.msra.mxu0 0
      %1739 = vmatprep.subr.bf16.mxu0 0
      %1740 = vmatpush1.bf16.msra.mxu0 0
      %1741 = vmatprep.subr.bf16.mxu0 0
      %1742 = vmatpush1.bf16.msra.mxu0 0
      %1743 = vmatprep.subr.bf16.mxu0 0
      %1744 = vmatpush1.bf16.msra.mxu0 0
      %1745 = vmatprep.mubr.bf16.mxu0 0
      %1746 = vmatmul.mubr.bf16.gmra.mrb[0].mxu0 %v1684
      %v1747 = vpop.f32.mrb[0].mxu0
      %v1748 = vadd.f32 0.0, %v1747
      %v1749 = vpop.f32.mrb[0].mxu0
      %v1750 = vpop.f32.mrb[0].mxu0
      %v1751 = vadd.f32 0.0, %v1750
      %v1752 = vpop.f32.mrb[0].mxu0
      %1753 = vmatprep.mubr.bf16.mxu0 0
      %1754 = vmatmul.mubr.bf16.gmra.mrb[0].mxu0 %v1687
      %v1755 = vpop.f32.mrb[0].mxu0
      %v1756 = vadd.f32 0.0, %v1755
      %v1757 = vpop.f32.mrb[0].mxu0
      %v1758 = vpop.f32.mrb[0].mxu0
      %v1759 = vadd.f32 0.0, %v1758
      %v1760 = vpop.f32.mrb[0].mxu0
      %1761 = vmatprep.mubr.bf16.mxu0 0
      %1762 = vmatmul.mubr.bf16.gmra.mrb[0].mxu0 %v1690
      %v1763 = vpop.f32.mrb[0].mxu0
      %v1764 = vadd.f32 0.0, %v1763
      %v1765 = vpop.f32.mrb[0].mxu0
      %v1766 = vpop.f32.mrb[0].mxu0
      %v1767 = vadd.f32 0.0, %v1766
      %v1768 = vpop.f32.mrb[0].mxu0
      %1769 = vmatprep.mubr.bf16.mxu0 0
      %1770 = vmatmul.mubr.bf16.gmra.mrb[0].mxu0 %v1693
      %v1771 = vpop.f32.mrb[0].mxu0
      %v1772 = vadd.f32 0.0, %v1771
      %v1773 = vpop.f32.mrb[0].mxu0
      %v1774 = vpop.f32.mrb[0].mxu0
      %v1775 = vadd.f32 0.0, %v1774
      %v1776 = vpop.f32.mrb[0].mxu0
      %1777 = vmatprep.mubr.bf16.mxu0 0
      %1778 = vmatmul.mubr.bf16.gmra.mrb[0].mxu0 %v1696
      %v1779 = vpop.f32.mrb[0].mxu0
      %v1780 = vadd.f32 0.0, %v1779
      %v1781 = vpop.f32.mrb[0].mxu0
      %v1782 = vpop.f32.mrb[0].mxu0
      %v1783 = vadd.f32 0.0, %v1782
      %v1784 = vpop.f32.mrb[0].mxu0
      %1785 = vmatprep.mubr.bf16.mxu0 0
      %1786 = vmatmul.mubr.bf16.gmra.mrb[0].mxu0 %v1699
      %v1787 = vpop.f32.mrb[0].mxu0
      %v1788 = vadd.f32 0.0, %v1787
      %v1789 = vpop.f32.mrb[0].mxu0
      %v1790 = vpop.f32.mrb[0].mxu0
      %v1791 = vadd.f32 0.0, %v1790
      %v1792 = vpop.f32.mrb[0].mxu0
      %1793 = vmatprep.mubr.bf16.mxu0 0
      %1794 = vmatmul.mubr.bf16.gmra.mrb[0].mxu0 %v1702
      %v1795 = vpop.f32.mrb[0].mxu0
      %v1796 = vadd.f32 0.0, %v1795
      %v1797 = vpop.f32.mrb[0].mxu0
      %v1798 = vpop.f32.mrb[0].mxu0
      %v1799 = vadd.f32 0.0, %v1798
      %v1800 = vpop.f32.mrb[0].mxu0
      %1801 = vmatprep.mubr.bf16.mxu0 0
      %1802 = vmatmul.mubr.bf16.gmra.mrb[0].mxu0 %v1705
      %v1803 = vpop.f32.mrb[0].mxu0
      %v1804 = vadd.f32 0.0, %v1803
      %v1805 = vpop.f32.mrb[0].mxu0
      %v1806 = vpop.f32.mrb[0].mxu0
      %v1807 = vadd.f32 0.0, %v1806
      %v1808 = vpop.f32.mrb[0].mxu0
      %1809 = vmatprep.mubr.bf16.mxu0 0
      %1810 = vmatmul.mubr.bf16.gmra.mrb[0].mxu0 %v1708
      %v1811 = vpop.f32.mrb[0].mxu0
      %v1812 = vadd.f32 0.0, %v1811
      %v1813 = vpop.f32.mrb[0].mxu0
      %v1814 = vpop.f32.mrb[0].mxu0
      %v1815 = vadd.f32 0.0, %v1814
      %v1816 = vpop.f32.mrb[0].mxu0
      %1817 = vdwg.mxu0
      %v1818 = vadd.f32 %v1643, %v1748
      %v1819 = vadd.f32 %v1644, %v1751
      %v1820 = vadd.f32 %v1645, %v1756
      %v1821 = vadd.f32 %v1646, %v1759
      %v1822 = vadd.f32 %v1647, %v1764
      %v1823 = vadd.f32 %v1648, %v1767
      %v1824 = vadd.f32 %v1649, %v1772
      %v1825 = vadd.f32 %v1650, %v1775
      %v1826 = vadd.f32 %v1651, %v1780
      %v1827 = vadd.f32 %v1652, %v1783
      %v1828 = vadd.f32 %v1653, %v1788
      %v1829 = vadd.f32 %v1654, %v1791
      %v1830 = vadd.f32 %v1655, %v1796
      %v1831 = vadd.f32 %v1656, %v1799
      %v1832 = vadd.f32 %v1657, %v1804
      %v1833 = vadd.f32 %v1658, %v1807
      %v1834 = vadd.f32 %v1659, %v1812
      %v1835 = vadd.f32 %v1660, %v1815
      %v1836 = vld [vmem:[%s2] sm:$0x1]
      %v1838 = vlaneseq
      %v1839 = vshrl.u32 %v1838, 7
      %v1840 = vsub.s32 0, %v1839
      %v1841 = vrot.slane %v1836, %v1840
      %v1843 = vadd.f32 %v1818, %v1841
      %v1844 = vadd.f32 %v1819, %v1841
      %v1845 = vadd.f32 %v1820, %v1841
      %v1846 = vadd.f32 %v1821, %v1841
      %v1847 = vadd.f32 %v1822, %v1841
      %v1848 = vadd.f32 %v1823, %v1841
      %v1849 = vadd.f32 %v1824, %v1841
      %v1850 = vadd.f32 %v1825, %v1841
      %v1851 = vadd.f32 %v1826, %v1841
      %v1852 = vadd.f32 %v1827, %v1841
      %v1853 = vadd.f32 %v1828, %v1841
      %v1854 = vadd.f32 %v1829, %v1841
      %v1855 = vadd.f32 %v1830, %v1841
      %v1856 = vadd.f32 %v1831, %v1841
      %v1857 = vadd.f32 %v1832, %v1841
      %v1858 = vadd.f32 %v1833, %v1841
      %v1859 = vadd.f32 %v1834, %v1841
      %v1860 = vadd.f32 %v1835, %v1841
      %v1861 = vxor.u32 %v1843, 2147483648
      %v1862 = vxor.u32 %v1844, 2147483648
      %v1863 = vxor.u32 %v1845, 2147483648
      %v1864 = vxor.u32 %v1846, 2147483648
      %v1865 = vxor.u32 %v1847, 2147483648
      %v1866 = vxor.u32 %v1848, 2147483648
      %v1867 = vxor.u32 %v1849, 2147483648
      %v1868 = vxor.u32 %v1850, 2147483648
      %v1869 = vxor.u32 %v1851, 2147483648
      %v1870 = vxor.u32 %v1852, 2147483648
      %v1871 = vxor.u32 %v1853, 2147483648
      %v1872 = vxor.u32 %v1854, 2147483648
      %v1873 = vxor.u32 %v1855, 2147483648
      %v1874 = vxor.u32 %v1856, 2147483648
      %v1875 = vxor.u32 %v1857, 2147483648
      %v1876 = vxor.u32 %v1858, 2147483648
      %v1877 = vxor.u32 %v1859, 2147483648
      %v1878 = vxor.u32 %v1860, 2147483648
      %v1879 = vmul.f32 %v1861, 1.442695
      %v1880 = vpow.pop %v1879
      %v1881 = vmul.f32 %v1862, 1.442695
      %v1882 = vpow.pop %v1881
      %v1883 = vmul.f32 %v1863, 1.442695
      %v1884 = vpow.pop %v1883
      %v1885 = vmul.f32 %v1864, 1.442695
      %v1886 = vpow.pop %v1885
      %v1887 = vmul.f32 %v1865, 1.442695
      %v1888 = vpow.pop %v1887
      %v1889 = vmul.f32 %v1866, 1.442695
      %v1890 = vpow.pop %v1889
      %v1891 = vmul.f32 %v1867, 1.442695
      %v1892 = vpow.pop %v1891
      %v1893 = vmul.f32 %v1868, 1.442695
      %v1894 = vpow.pop %v1893
      %v1895 = vmul.f32 %v1869, 1.442695
      %v1896 = vpow.pop %v1895
      %v1897 = vmul.f32 %v1870, 1.442695
      %v1898 = vpow.pop %v1897
      %v1899 = vmul.f32 %v1871, 1.442695
      %v1900 = vpow.pop %v1899
      %v1901 = vmul.f32 %v1872, 1.442695
      %v1902 = vpow.pop %v1901
      %v1903 = vmul.f32 %v1873, 1.442695
      %v1904 = vpow.pop %v1903
      %v1905 = vmul.f32 %v1874, 1.442695
      %v1906 = vpow.pop %v1905
      %v1907 = vmul.f32 %v1875, 1.442695
      %v1908 = vpow.pop %v1907
      %v1909 = vmul.f32 %v1876, 1.442695
      %v1910 = vpow.pop %v1909
      %v1911 = vmul.f32 %v1877, 1.442695
      %v1912 = vpow.pop %v1911
      %v1913 = vmul.f32 %v1878, 1.442695
      %v1914 = vpow.pop %v1913
      %v1915 = vadd.f32 %v1880, 1.0
      %v1916 = vadd.f32 %v1882, 1.0
      %v1917 = vadd.f32 %v1884, 1.0
      %v1918 = vadd.f32 %v1886, 1.0
      %v1919 = vadd.f32 %v1888, 1.0
      %v1920 = vadd.f32 %v1890, 1.0
      %v1921 = vadd.f32 %v1892, 1.0
      %v1922 = vadd.f32 %v1894, 1.0
      %v1923 = vadd.f32 %v1896, 1.0
      %v1924 = vadd.f32 %v1898, 1.0
      %v1925 = vadd.f32 %v1900, 1.0
      %v1926 = vadd.f32 %v1902, 1.0
      %v1927 = vadd.f32 %v1904, 1.0
      %v1928 = vadd.f32 %v1906, 1.0
      %v1929 = vadd.f32 %v1908, 1.0
      %v1930 = vadd.f32 %v1910, 1.0
      %v1931 = vadd.f32 %v1912, 1.0
      %v1932 = vadd.f32 %v1914, 1.0
      %v1933 = vrcp.pop %v1915
      %v1934 = vmul.f32 1.0, %v1933
      %v1935 = vrcp.pop %v1916
      %v1936 = vmul.f32 1.0, %v1935
      %v1937 = vrcp.pop %v1917
      %v1938 = vmul.f32 1.0, %v1937
      %v1939 = vrcp.pop %v1918
      %v1940 = vmul.f32 1.0, %v1939
      %v1941 = vrcp.pop %v1919
      %v1942 = vmul.f32 1.0, %v1941
      %v1943 = vrcp.pop %v1920
      %v1944 = vmul.f32 1.0, %v1943
      %v1945 = vrcp.pop %v1921
      %v1946 = vmul.f32 1.0, %v1945
      %v1947 = vrcp.pop %v1922
      %v1948 = vmul.f32 1.0, %v1947
      %v1949 = vrcp.pop %v1923
      %v1950 = vmul.f32 1.0, %v1949
      %v1951 = vrcp.pop %v1924
      %v1952 = vmul.f32 1.0, %v1951
      %v1953 = vrcp.pop %v1925
      %v1954 = vmul.f32 1.0, %v1953
      %v1955 = vrcp.pop %v1926
      %v1956 = vmul.f32 1.0, %v1955
      %v1957 = vrcp.pop %v1927
      %v1958 = vmul.f32 1.0, %v1957
      %v1959 = vrcp.pop %v1928
      %v1960 = vmul.f32 1.0, %v1959
      %v1961 = vrcp.pop %v1929
      %v1962 = vmul.f32 1.0, %v1961
      %v1963 = vrcp.pop %v1930
      %v1964 = vmul.f32 1.0, %v1963
      %v1965 = vrcp.pop %v1931
      %v1966 = vmul.f32 1.0, %v1965
      %v1967 = vrcp.pop %v1932
      %v1968 = vmul.f32 1.0, %v1967
      %v1969 = vmul.f32 %v1843, %v1934
      %v1970 = vmul.f32 %v1844, %v1936
      %v1971 = vmul.f32 %v1845, %v1938
      %v1972 = vmul.f32 %v1846, %v1940
      %v1973 = vmul.f32 %v1847, %v1942
      %v1974 = vmul.f32 %v1848, %v1944
      %v1975 = vmul.f32 %v1849, %v1946
      %v1976 = vmul.f32 %v1850, %v1948
      %v1977 = vmul.f32 %v1851, %v1950
      %v1978 = vmul.f32 %v1852, %v1952
      %v1979 = vmul.f32 %v1853, %v1954
      %v1980 = vmul.f32 %v1854, %v1956
      %v1981 = vmul.f32 %v1855, %v1958
      %v1982 = vmul.f32 %v1856, %v1960
      %v1983 = vmul.f32 %v1857, %v1962
      %v1984 = vmul.f32 %v1858, %v1964
      %v1985 = vmul.f32 %v1859, %v1966
      %v1986 = vmul.f32 %v1860, %v1968
      %v1987 = vlaneseq
      %v1988 = vshrl.u32 %v1987, 7
      %v1989 = vadd.s32 %v1988, 8
      %v1990 = vadd.s32 %v1988, 16
      %v1991 = vadd.s32 %v1988, 24
      %v1992 = vadd.s32 %v1988, 32
      %v1993 = vadd.s32 %v1988, 40
      %v1994 = vadd.s32 %v1988, 48
      %v1995 = vadd.s32 %v1988, 56
      %v1996 = vadd.s32 %v1988, 64
      %v1997 = vadd.s32 %v1988, 72
      %v1998 = vadd.s32 %v1988, 80
      %v1999 = vadd.s32 %v1988, 88
      %v2000 = vadd.s32 %v1988, 96
      %v2001 = vadd.s32 %v1988, 104
      %v2002 = vadd.s32 %v1988, 112
      %v2003 = vadd.s32 %v1988, 120
      %v2004 = vadd.s32 %v1988, 128
      %v2005 = vadd.s32 %v1988, 136
      %vm2006 = vcmp.lt.s32.totalorder %v1988, 0
      %v2007 = vsub.s32 0, %v1988
      %v2008 = vsel %vm2006, %v2007, %v1988
      %v2009 = vmul.u32.u64.compose %v2008, 3817748708
      %v2010 = vextract.low.u32 %v2009
      %v2011 = vextract.high.u32 %v2009
      %v2012 = vshrl.u32 %v2011, 4
      %v2013 = vmul.u32 %v2012, 18
      %v2014 = vsub.s32 %v2008, %v2013
      %v2015 = vsub.s32 0, %v2014
      %v2016 = vsel %vm2006, %v2015, %v2014
      %vm2017 = vcmp.lt.s32.totalorder %v1989, 0
      %v2018 = vsub.s32 0, %v1989
      %v2019 = vsel %vm2017, %v2018, %v1989
      %v2020 = vmul.u32.u64.compose %v2019, 3817748708
      %v2021 = vextract.low.u32 %v2020
      %v2022 = vextract.high.u32 %v2020
      %v2023 = vshrl.u32 %v2022, 4
      %v2024 = vmul.u32 %v2023, 18
      %v2025 = vsub.s32 %v2019, %v2024
      %v2026 = vsub.s32 0, %v2025
      %v2027 = vsel %vm2017, %v2026, %v2025
      %vm2028 = vcmp.lt.s32.totalorder %v1990, 0
      %v2029 = vsub.s32 0, %v1990
      %v2030 = vsel %vm2028, %v2029, %v1990
      %v2031 = vmul.u32.u64.compose %v2030, 3817748708
      %v2032 = vextract.low.u32 %v2031
      %v2033 = vextract.high.u32 %v2031
      %v2034 = vshrl.u32 %v2033, 4
      %v2035 = vmul.u32 %v2034, 18
      %v2036 = vsub.s32 %v2030, %v2035
      %v2037 = vsub.s32 0, %v2036
      %v2038 = vsel %vm2028, %v2037, %v2036
      %vm2039 = vcmp.lt.s32.totalorder %v1991, 0
      %v2040 = vsub.s32 0, %v1991
      %v2041 = vsel %vm2039, %v2040, %v1991
      %v2042 = vmul.u32.u64.compose %v2041, 3817748708
      %v2043 = vextract.low.u32 %v2042
      %v2044 = vextract.high.u32 %v2042
      %v2045 = vshrl.u32 %v2044, 4
      %v2046 = vmul.u32 %v2045, 18
      %v2047 = vsub.s32 %v2041, %v2046
      %v2048 = vsub.s32 0, %v2047
      %v2049 = vsel %vm2039, %v2048, %v2047
      %vm2050 = vcmp.lt.s32.totalorder %v1992, 0
      %v2051 = vsub.s32 0, %v1992
      %v2052 = vsel %vm2050, %v2051, %v1992
      %v2053 = vmul.u32.u64.compose %v2052, 3817748708
      %v2054 = vextract.low.u32 %v2053
      %v2055 = vextract.high.u32 %v2053
      %v2056 = vshrl.u32 %v2055, 4
      %v2057 = vmul.u32 %v2056, 18
      %v2058 = vsub.s32 %v2052, %v2057
      %v2059 = vsub.s32 0, %v2058
      %v2060 = vsel %vm2050, %v2059, %v2058
      %vm2061 = vcmp.lt.s32.totalorder %v1993, 0
      %v2062 = vsub.s32 0, %v1993
      %v2063 = vsel %vm2061, %v2062, %v1993
      %v2064 = vmul.u32.u64.compose %v2063, 3817748708
      %v2065 = vextract.low.u32 %v2064
      %v2066 = vextract.high.u32 %v2064
      %v2067 = vshrl.u32 %v2066, 4
      %v2068 = vmul.u32 %v2067, 18
      %v2069 = vsub.s32 %v2063, %v2068
      %v2070 = vsub.s32 0, %v2069
      %v2071 = vsel %vm2061, %v2070, %v2069
      %vm2072 = vcmp.lt.s32.totalorder %v1994, 0
      %v2073 = vsub.s32 0, %v1994
      %v2074 = vsel %vm2072, %v2073, %v1994
      %v2075 = vmul.u32.u64.compose %v2074, 3817748708
      %v2076 = vextract.low.u32 %v2075
      %v2077 = vextract.high.u32 %v2075
      %v2078 = vshrl.u32 %v2077, 4
      %v2079 = vmul.u32 %v2078, 18
      %v2080 = vsub.s32 %v2074, %v2079
      %v2081 = vsub.s32 0, %v2080
      %v2082 = vsel %vm2072, %v2081, %v2080
      %vm2083 = vcmp.lt.s32.totalorder %v1995, 0
      %v2084 = vsub.s32 0, %v1995
      %v2085 = vsel %vm2083, %v2084, %v1995
      %v2086 = vmul.u32.u64.compose %v2085, 3817748708
      %v2087 = vextract.low.u32 %v2086
      %v2088 = vextract.high.u32 %v2086
      %v2089 = vshrl.u32 %v2088, 4
      %v2090 = vmul.u32 %v2089, 18
      %v2091 = vsub.s32 %v2085, %v2090
      %v2092 = vsub.s32 0, %v2091
      %v2093 = vsel %vm2083, %v2092, %v2091
      %vm2094 = vcmp.lt.s32.totalorder %v1996, 0
      %v2095 = vsub.s32 0, %v1996
      %v2096 = vsel %vm2094, %v2095, %v1996
      %v2097 = vmul.u32.u64.compose %v2096, 3817748708
      %v2098 = vextract.low.u32 %v2097
      %v2099 = vextract.high.u32 %v2097
      %v2100 = vshrl.u32 %v2099, 4
      %v2101 = vmul.u32 %v2100, 18
      %v2102 = vsub.s32 %v2096, %v2101
      %v2103 = vsub.s32 0, %v2102
      %v2104 = vsel %vm2094, %v2103, %v2102
      %vm2105 = vcmp.lt.s32.totalorder %v1997, 0
      %v2106 = vsub.s32 0, %v1997
      %v2107 = vsel %vm2105, %v2106, %v1997
      %v2108 = vmul.u32.u64.compose %v2107, 3817748708
      %v2109 = vextract.low.u32 %v2108
      %v2110 = vextract.high.u32 %v2108
      %v2111 = vshrl.u32 %v2110, 4
      %v2112 = vmul.u32 %v2111, 18
      %v2113 = vsub.s32 %v2107, %v2112
      %v2114 = vsub.s32 0, %v2113
      %v2115 = vsel %vm2105, %v2114, %v2113
      %vm2116 = vcmp.lt.s32.totalorder %v1998, 0
      %v2117 = vsub.s32 0, %v1998
      %v2118 = vsel %vm2116, %v2117, %v1998
      %v2119 = vmul.u32.u64.compose %v2118, 3817748708
      %v2120 = vextract.low.u32 %v2119
      %v2121 = vextract.high.u32 %v2119
      %v2122 = vshrl.u32 %v2121, 4
      %v2123 = vmul.u32 %v2122, 18
      %v2124 = vsub.s32 %v2118, %v2123
      %v2125 = vsub.s32 0, %v2124
      %v2126 = vsel %vm2116, %v2125, %v2124
      %vm2127 = vcmp.lt.s32.totalorder %v1999, 0
      %v2128 = vsub.s32 0, %v1999
      %v2129 = vsel %vm2127, %v2128, %v1999
      %v2130 = vmul.u32.u64.compose %v2129, 3817748708
      %v2131 = vextract.low.u32 %v2130
      %v2132 = vextract.high.u32 %v2130
      %v2133 = vshrl.u32 %v2132, 4
      %v2134 = vmul.u32 %v2133, 18
      %v2135 = vsub.s32 %v2129, %v2134
      %v2136 = vsub.s32 0, %v2135
      %v2137 = vsel %vm2127, %v2136, %v2135
      %vm2138 = vcmp.lt.s32.totalorder %v2000, 0
      %v2139 = vsub.s32 0, %v2000
      %v2140 = vsel %vm2138, %v2139, %v2000
      %v2141 = vmul.u32.u64.compose %v2140, 3817748708
      %v2142 = vextract.low.u32 %v2141
      %v2143 = vextract.high.u32 %v2141
      %v2144 = vshrl.u32 %v2143, 4
      %v2145 = vmul.u32 %v2144, 18
      %v2146 = vsub.s32 %v2140, %v2145
      %v2147 = vsub.s32 0, %v2146
      %v2148 = vsel %vm2138, %v2147, %v2146
      %vm2149 = vcmp.lt.s32.totalorder %v2001, 0
      %v2150 = vsub.s32 0, %v2001
      %v2151 = vsel %vm2149, %v2150, %v2001
      %v2152 = vmul.u32.u64.compose %v2151, 3817748708
      %v2153 = vextract.low.u32 %v2152
      %v2154 = vextract.high.u32 %v2152
      %v2155 = vshrl.u32 %v2154, 4
      %v2156 = vmul.u32 %v2155, 18
      %v2157 = vsub.s32 %v2151, %v2156
      %v2158 = vsub.s32 0, %v2157
      %v2159 = vsel %vm2149, %v2158, %v2157
      %vm2160 = vcmp.lt.s32.totalorder %v2002, 0
      %v2161 = vsub.s32 0, %v2002
      %v2162 = vsel %vm2160, %v2161, %v2002
      %v2163 = vmul.u32.u64.compose %v2162, 3817748708
      %v2164 = vextract.low.u32 %v2163
      %v2165 = vextract.high.u32 %v2163
      %v2166 = vshrl.u32 %v2165, 4
      %v2167 = vmul.u32 %v2166, 18
      %v2168 = vsub.s32 %v2162, %v2167
      %v2169 = vsub.s32 0, %v2168
      %v2170 = vsel %vm2160, %v2169, %v2168
      %vm2171 = vcmp.lt.s32.totalorder %v2003, 0
      %v2172 = vsub.s32 0, %v2003
      %v2173 = vsel %vm2171, %v2172, %v2003
      %v2174 = vmul.u32.u64.compose %v2173, 3817748708
      %v2175 = vextract.low.u32 %v2174
      %v2176 = vextract.high.u32 %v2174
      %v2177 = vshrl.u32 %v2176, 4
      %v2178 = vmul.u32 %v2177, 18
      %v2179 = vsub.s32 %v2173, %v2178
      %v2180 = vsub.s32 0, %v2179
      %v2181 = vsel %vm2171, %v2180, %v2179
      %vm2182 = vcmp.lt.s32.totalorder %v2004, 0
      %v2183 = vsub.s32 0, %v2004
      %v2184 = vsel %vm2182, %v2183, %v2004
      %v2185 = vmul.u32.u64.compose %v2184, 3817748708
      %v2186 = vextract.low.u32 %v2185
      %v2187 = vextract.high.u32 %v2185
      %v2188 = vshrl.u32 %v2187, 4
      %v2189 = vmul.u32 %v2188, 18
      %v2190 = vsub.s32 %v2184, %v2189
      %v2191 = vsub.s32 0, %v2190
      %v2192 = vsel %vm2182, %v2191, %v2190
      %vm2193 = vcmp.lt.s32.totalorder %v2005, 0
      %v2194 = vsub.s32 0, %v2005
      %v2195 = vsel %vm2193, %v2194, %v2005
      %v2196 = vmul.u32.u64.compose %v2195, 3817748708
      %v2197 = vextract.low.u32 %v2196
      %v2198 = vextract.high.u32 %v2196
      %v2199 = vshrl.u32 %v2198, 4
      %v2200 = vmul.u32 %v2199, 18
      %v2201 = vsub.s32 %v2195, %v2200
      %v2202 = vsub.s32 0, %v2201
      %v2203 = vsel %vm2193, %v2202, %v2201
      %vm2204 = vcmp.ne.s32.totalorder %v2016, 0
      %vm2205 = vcmp.ne.s32.totalorder %v2027, 0
      %vm2206 = vcmp.ne.s32.totalorder %v2038, 0
      %vm2207 = vcmp.ne.s32.totalorder %v2049, 0
      %vm2208 = vcmp.ne.s32.totalorder %v2060, 0
      %vm2209 = vcmp.ne.s32.totalorder %v2071, 0
      %vm2210 = vcmp.ne.s32.totalorder %v2082, 0
      %vm2211 = vcmp.ne.s32.totalorder %v2093, 0
      %vm2212 = vcmp.ne.s32.totalorder %v2104, 0
      %vm2213 = vcmp.ne.s32.totalorder %v2115, 0
      %vm2214 = vcmp.ne.s32.totalorder %v2126, 0
      %vm2215 = vcmp.ne.s32.totalorder %v2137, 0
      %vm2216 = vcmp.ne.s32.totalorder %v2148, 0
      %vm2217 = vcmp.ne.s32.totalorder %v2159, 0
      %vm2218 = vcmp.ne.s32.totalorder %v2170, 0
      %vm2219 = vcmp.ne.s32.totalorder %v2181, 0
      %vm2220 = vcmp.ne.s32.totalorder %v2192, 0
      %vm2221 = vcmp.ne.s32.totalorder %v2203, 0
      %vm2222 = vcmp.lt.s32.totalorder %v2016, 0
      %vm2223 = vcmp.lt.s32.totalorder %v2027, 0
      %vm2224 = vcmp.lt.s32.totalorder %v2038, 0
      %vm2225 = vcmp.lt.s32.totalorder %v2049, 0
      %vm2226 = vcmp.lt.s32.totalorder %v2060, 0
      %vm2227 = vcmp.lt.s32.totalorder %v2071, 0
      %vm2228 = vcmp.lt.s32.totalorder %v2082, 0
      %vm2229 = vcmp.lt.s32.totalorder %v2093, 0
      %vm2230 = vcmp.lt.s32.totalorder %v2104, 0
      %vm2231 = vcmp.lt.s32.totalorder %v2115, 0
      %vm2232 = vcmp.lt.s32.totalorder %v2126, 0
      %vm2233 = vcmp.lt.s32.totalorder %v2137, 0
      %vm2234 = vcmp.lt.s32.totalorder %v2148, 0
      %vm2235 = vcmp.lt.s32.totalorder %v2159, 0
      %vm2236 = vcmp.lt.s32.totalorder %v2170, 0
      %vm2237 = vcmp.lt.s32.totalorder %v2181, 0
      %vm2238 = vcmp.lt.s32.totalorder %v2192, 0
      %vm2239 = vcmp.lt.s32.totalorder %v2203, 0
      %vm2240 = vmand %vm2222, %vm2204
      %vm2241 = vmand %vm2223, %vm2205
      %vm2242 = vmand %vm2224, %vm2206
      %vm2243 = vmand %vm2225, %vm2207
      %vm2244 = vmand %vm2226, %vm2208
      %vm2245 = vmand %vm2227, %vm2209
      %vm2246 = vmand %vm2228, %vm2210
      %vm2247 = vmand %vm2229, %vm2211
      %vm2248 = vmand %vm2230, %vm2212
      %vm2249 = vmand %vm2231, %vm2213
      %vm2250 = vmand %vm2232, %vm2214
      %vm2251 = vmand %vm2233, %vm2215
      %vm2252 = vmand %vm2234, %vm2216
      %vm2253 = vmand %vm2235, %vm2217
      %vm2254 = vmand %vm2236, %vm2218
      %vm2255 = vmand %vm2237, %vm2219
      %vm2256 = vmand %vm2238, %vm2220
      %vm2257 = vmand %vm2239, %vm2221
      %v2258 = vadd.s32 %v2016, 18
      %v2259 = vadd.s32 %v2027, 18
      %v2260 = vadd.s32 %v2038, 18
      %v2261 = vadd.s32 %v2049, 18
      %v2262 = vadd.s32 %v2060, 18
      %v2263 = vadd.s32 %v2071, 18
      %v2264 = vadd.s32 %v2082, 18
      %v2265 = vadd.s32 %v2093, 18
      %v2266 = vadd.s32 %v2104, 18
      %v2267 = vadd.s32 %v2115, 18
      %v2268 = vadd.s32 %v2126, 18
      %v2269 = vadd.s32 %v2137, 18
      %v2270 = vadd.s32 %v2148, 18
      %v2271 = vadd.s32 %v2159, 18
      %v2272 = vadd.s32 %v2170, 18
      %v2273 = vadd.s32 %v2181, 18
      %v2274 = vadd.s32 %v2192, 18
      %v2275 = vadd.s32 %v2203, 18
      %v2276 = vsel %vm2240, %v2258, %v2016
      %v2277 = vsel %vm2241, %v2259, %v2027
      %v2278 = vsel %vm2242, %v2260, %v2038
      %v2279 = vsel %vm2243, %v2261, %v2049
      %v2280 = vsel %vm2244, %v2262, %v2060
      %v2281 = vsel %vm2245, %v2263, %v2071
      %v2282 = vsel %vm2246, %v2264, %v2082
      %v2283 = vsel %vm2247, %v2265, %v2093
      %v2284 = vsel %vm2248, %v2266, %v2104
      %v2285 = vsel %vm2249, %v2267, %v2115
      %v2286 = vsel %vm2250, %v2268, %v2126
      %v2287 = vsel %vm2251, %v2269, %v2137
      %v2288 = vsel %vm2252, %v2270, %v2148
      %v2289 = vsel %vm2253, %v2271, %v2159
      %v2290 = vsel %vm2254, %v2272, %v2170
      %v2291 = vsel %vm2255, %v2273, %v2181
      %v2292 = vsel %vm2256, %v2274, %v2192
      %v2293 = vsel %vm2257, %v2275, %v2203
      %vm2294 = vcmp.lt.s32.totalorder %v2276, 16
      %vm2295 = vcmp.lt.s32.totalorder %v2277, 16
      %vm2296 = vcmp.lt.s32.totalorder %v2278, 16
      %vm2297 = vcmp.lt.s32.totalorder %v2279, 16
      %vm2298 = vcmp.lt.s32.totalorder %v2280, 16
      %vm2299 = vcmp.lt.s32.totalorder %v2281, 16
      %vm2300 = vcmp.lt.s32.totalorder %v2282, 16
      %vm2301 = vcmp.lt.s32.totalorder %v2283, 16
      %vm2302 = vcmp.lt.s32.totalorder %v2284, 16
      %vm2303 = vcmp.lt.s32.totalorder %v2285, 16
      %vm2304 = vcmp.lt.s32.totalorder %v2286, 16
      %vm2305 = vcmp.lt.s32.totalorder %v2287, 16
      %vm2306 = vcmp.lt.s32.totalorder %v2288, 16
      %vm2307 = vcmp.lt.s32.totalorder %v2289, 16
      %vm2308 = vcmp.lt.s32.totalorder %v2290, 16
      %vm2309 = vcmp.lt.s32.totalorder %v2291, 16
      %vm2310 = vcmp.lt.s32.totalorder %v2292, 16
      %vm2311 = vcmp.lt.s32.totalorder %v2293, 16
      %v2312 = vsel %vm2294, 1, 0
      %v2313 = vsel %vm2295, 1, 0
      %v2314 = vsel %vm2296, 1, 0
      %v2315 = vsel %vm2297, 1, 0
      %v2316 = vsel %vm2298, 1, 0
      %v2317 = vsel %vm2299, 1, 0
      %v2318 = vsel %vm2300, 1, 0
      %v2319 = vsel %vm2301, 1, 0
      %v2320 = vsel %vm2302, 1, 0
      %v2321 = vsel %vm2303, 1, 0
      %v2322 = vsel %vm2304, 1, 0
      %v2323 = vsel %vm2305, 1, 0
      %v2324 = vsel %vm2306, 1, 0
      %v2325 = vsel %vm2307, 1, 0
      %v2326 = vsel %vm2308, 1, 0
      %v2327 = vsel %vm2309, 1, 0
      %v2328 = vsel %vm2310, 1, 0
      %v2329 = vsel %vm2311, 1, 0
      %vm2330 = vcmp.eq.s32.totalorder %v2312, 1
      %vm2331 = vcmp.eq.s32.totalorder %v2313, 1
      %vm2332 = vcmp.eq.s32.totalorder %v2314, 1
      %vm2333 = vcmp.eq.s32.totalorder %v2315, 1
      %vm2334 = vcmp.eq.s32.totalorder %v2316, 1
      %vm2335 = vcmp.eq.s32.totalorder %v2317, 1
      %vm2336 = vcmp.eq.s32.totalorder %v2318, 1
      %vm2337 = vcmp.eq.s32.totalorder %v2319, 1
      %vm2338 = vcmp.eq.s32.totalorder %v2320, 1
      %vm2339 = vcmp.eq.s32.totalorder %v2321, 1
      %vm2340 = vcmp.eq.s32.totalorder %v2322, 1
      %vm2341 = vcmp.eq.s32.totalorder %v2323, 1
      %vm2342 = vcmp.eq.s32.totalorder %v2324, 1
      %vm2343 = vcmp.eq.s32.totalorder %v2325, 1
      %vm2344 = vcmp.eq.s32.totalorder %v2326, 1
      %vm2345 = vcmp.eq.s32.totalorder %v2327, 1
      %vm2346 = vcmp.eq.s32.totalorder %v2328, 1
      %vm2347 = vcmp.eq.s32.totalorder %v2329, 1
      %v2348 = vsel %vm2330, %v1969, 0.0
      %v2349 = vsel %vm2331, %v1970, 0.0
      %v2350 = vsel %vm2332, %v1971, 0.0
      %v2351 = vsel %vm2333, %v1972, 0.0
      %v2352 = vsel %vm2334, %v1973, 0.0
      %v2353 = vsel %vm2335, %v1974, 0.0
      %v2354 = vsel %vm2336, %v1975, 0.0
      %v2355 = vsel %vm2337, %v1976, 0.0
      %v2356 = vsel %vm2338, %v1977, 0.0
      %v2357 = vsel %vm2339, %v1978, 0.0
      %v2358 = vsel %vm2340, %v1979, 0.0
      %v2359 = vsel %vm2341, %v1980, 0.0
      %v2360 = vsel %vm2342, %v1981, 0.0
      %v2361 = vsel %vm2343, %v1982, 0.0
      %v2362 = vsel %vm2344, %v1983, 0.0
      %v2363 = vsel %vm2345, %v1984, 0.0
      %v2364 = vsel %vm2346, %v1985, 0.0
      %v2365 = vsel %vm2347, %v1986, 0.0
      %v2366 = vld [vmem:[#allocation2] sm:$0x1]
      %v2367 = vadd.f32 %v2348, %v2349
      %v2368 = vadd.f32 %v2367, %v2350
      %v2369 = vadd.f32 %v2368, %v2351
      %v2370 = vadd.f32 %v2369, %v2352
      %v2371 = vadd.f32 %v2370, %v2353
      %v2372 = vadd.f32 %v2371, %v2354
      %v2373 = vadd.f32 %v2372, %v2355
      %v2374 = vadd.f32 %v2373, %v2356
      %v2375 = vadd.f32 %v2374, %v2357
      %v2376 = vadd.f32 %v2375, %v2358
      %v2377 = vadd.f32 %v2376, %v2359
      %v2378 = vadd.f32 %v2377, %v2360
      %v2379 = vadd.f32 %v2378, %v2361
      %v2380 = vadd.f32 %v2379, %v2362
      %v2381 = vadd.f32 %v2380, %v2363
      %v2382 = vadd.f32 %v2381, %v2364
      %v2383 = vadd.f32 %v2382, %v2365
      %v2384 = vrot.slane %v2383, 4
      %v2385 = vadd.f32 %v2383, %v2384
      %v2386 = vrot.slane %v2385, 2
      %v2387 = vadd.f32 %v2385, %v2386
      %v2388 = vrot.slane %v2387, 1
      %v2389 = vadd.f32 %v2387, %v2388
      %v2390 = vadd.f32 %v2366, %v2389
      %2391 = vst [vmem:[#allocation2] sm:$0x1] %v2390
      %p2392 = scmp.eq.s32.totalorder %s19, 1
      // Predicated region
      $region37: #{mask_classifier_forward.2} parent=31 // pred_check
        %p2393 = pneg %p2392
      $region38: #{mask_classifier_forward.2} parent=31 // pred_check_branch
        %2395 = sbr.rel (%p2393) target = $region40
      $region39: #{mask_classifier_forward.2} parent=31 // pred_region
        %v2396 = vld [vmem:[#allocation2] sm:$0x1]
        %v2397 = vmul.f32 %v2396, 0.00390625
        %2398 = vst [vmem:[%s192] sm:$0x1] %v2397
      $region40: #{mask_classifier_forward.2} parent=31 // pred_fallthru
        _
      %p2399 = scmp.lt.s32.totalorder %s18, 1
      %s2400 = scalar_select %p2399, %s18, 1
      %s2401 = scalar_lea.vmem %s3, %s2400
      // Predicated region
      $region41: #{mask_classifier_forward.2} parent=31 // pred_check
        %p2402 = pneg %p114
      $region42: #{mask_classifier_forward.2} parent=31 // pred_check_branch
        %2404 = sbr.rel (%p2402) target = $region44
      $region43: #{mask_classifier_forward.2} parent=31 // pred_region
        _
      $region44: #{mask_classifier_forward.2} parent=31 // pred_fallthru
        _
    $region32: #{mask_classifier_forward.2} parent=5 // pred_fallthru
      _
    %p2405 = scmp.le.s32.totalorder 2, %s9
    // Predicated region
    $region45: #{mask_classifier_forward.2} parent=5 // pred_check
      %p2406 = pneg %p2405
    $region46: #{mask_classifier_forward.2} parent=5 // pred_check_branch
      %2408 = sbr.rel (%p2406) target = $region48
    $region47: #{mask_classifier_forward.2} parent=5 // pred_region
      %s2409 = ssub.s32 %s9, 2
      // Predicated region
      $region49: #{mask_classifier_forward.2} parent=47 // pred_check
        %p2410 = pneg %p120
      $region50: #{mask_classifier_forward.2} parent=47 // pred_check_branch
        %2412 = sbr.rel (%p2410) target = $region52
      $region51: #{mask_classifier_forward.2} parent=47 // pred_region
        %p2413 = scmp.lt.s32.totalorder %s20, 1
        %s2414 = scalar_select %p2413, %s20, 1
        %s2415 = scalar_lea.vmem %s3, %s2414
      $region52: #{mask_classifier_forward.2} parent=47 // pred_fallthru
        _
    $region48: #{mask_classifier_forward.2} parent=5 // pred_fallthru
      _
  $region6: #{mask_classifier_forward.2} parent=0 // loop_footer
    %s13 = sadd.s32 1, %s9
  $region7: #{mask_classifier_forward.2} parent=0 // loop_footer_branch
    %8 = sbr.rel target = $region3
  $region8: #{mask_classifier_forward.2} parent=0 // loop_exit
    _

</llo_original>
